<compile_context>
chip_gen: v7x
topology: tpu7x:2x2x1
jax: 0.10.0
libtpu: 0.0.40
codegen_flags: <defaults>
</compile_context>

<pallas_src>
import jax
import jax.numpy as jnp
import numpy as np
from jax.experimental import pallas as pl
from jax.experimental.pallas import tpu as pltpu

IMAGE_SIZE = 16
K = 5                       # conv kernel size
PAD = 2                     # conv padding
OUT1 = 16                   # cnn1 out channels
OUT2 = 32                   # cnn2 out channels
NUM_CLASSES = 10
OUT_PAD = 128               # lane-dense padded class dim

H1 = W1 = IMAGE_SIZE        # 16
H2 = W2 = IMAGE_SIZE // 2   # 8
H3 = W3 = IMAGE_SIZE // 4   # 4
WP1 = IMAGE_SIZE + 2 * PAD  # 20 (zero-padded input width)

L1 = W1 * OUT1              # 256  conv1 output lanes, packed (w, c)
L2 = W2 * OUT2              # 256  conv2 output lanes, packed (w, c)
K1 = K * WP1                # 100  conv1 contraction (kh, padded width)
K2 = K * 2 * W2 * OUT1      # 1280 conv2 contraction (kh, raw conv1-width group, c)
KF = H3 * 2 * W3 * OUT2     # 1024 fc contraction (h3, raw conv2-width group, c)


def cnn_kernel(x_ref, t1_ref, b1_ref, t2_ref, b2_ref, fcw_ref, fcb_ref, out_ref):
    nb = x_ref.shape[1]

    # ---- conv1: single Toeplitz-over-width matmul (in-kernel im2col) -----------
    x = x_ref[...].astype(jnp.bfloat16)                            # (20, nb, 20)
    lhs1 = jnp.concatenate([x[kh:kh + H1] for kh in range(K)], axis=-1)  # (16, nb, 100)
    z1 = jnp.dot(lhs1.reshape(H1 * nb, K1), t1_ref[...],
                 preferred_element_type=jnp.float32)               # (16*nb, 256)
    a1 = jnp.maximum(z1.reshape(H1, nb, L1) + b1_ref[...], 0.0)    # lanes = w*16 + c

    # ---- maxpool1 (2x2): rows pair-wise (major), width pair-wise (16-lane grps) -
    a1h = jnp.max(a1.reshape(H2, 2, nb, L1), axis=1)               # (8, nb, 256)
    sh1 = jnp.concatenate(
        [a1h[:, :, OUT1:], jnp.zeros((H2, nb, OUT1), jnp.float32)], axis=-1)
    q1 = jnp.maximum(a1h, sh1).astype(jnp.bfloat16)                # even groups = pooled

    # ---- conv2: zero height halo, 5 lane-aligned kh concats, one matmul --------
    zrow = jnp.zeros((PAD, nb, L1), jnp.bfloat16)
    q1p = jnp.concatenate([zrow, q1, zrow], axis=0)                # (12, nb, 256)
    lhs2 = jnp.concatenate([q1p[kh:kh + H2] for kh in range(K)], axis=-1)  # (8, nb, 1280)
    z2 = jnp.dot(lhs2.reshape(H2 * nb, K2), t2_ref[...],
                 preferred_element_type=jnp.float32)               # (8*nb, 256)
    a2 = jnp.maximum(z2.reshape(H2, nb, L2) + b2_ref[...], 0.0)    # lanes = w*32 + c

    # ---- maxpool2 ---------------------------------------------------------------
    a2h = jnp.max(a2.reshape(H3, 2, nb, L2), axis=1)               # (4, nb, 256)
    sh2 = jnp.concatenate(
        [a2h[:, :, OUT2:], jnp.zeros((H3, nb, OUT2), jnp.float32)], axis=-1)
    q2 = jnp.maximum(a2h, sh2).astype(jnp.bfloat16)                # (4, nb, 256)

    # ---- fc: 4 lane-aligned concats -> one (nb, 1024) x (1024, 128) matmul ------
    feats = jnp.concatenate([q2[h] for h in range(H3)], axis=-1)   # (nb, 1024)
    out_ref[...] = (jnp.dot(feats, fcw_ref[...], preferred_element_type=jnp.float32)
                    + fcb_ref[...])


def _round_up(v, m):
    return ((v + m - 1) // m) * m


def _pack_weights(params):
    """Rearrange PyTorch-layout weights into the kernel's Toeplitz/packed operands."""
    w1, b1, w2, b2, fcw, fcb = params

    # conv1: t1[kh*WP1 + wp, w*OUT1 + o] = w1[o, 0, kh, wp - w]  (0 <= wp - w < K)
    wp = jnp.arange(WP1)[:, None]
    w = jnp.arange(W1)[None, :]
    kw = wp - w
    valid = (kw >= 0) & (kw < K)
    w1_hw = jnp.transpose(w1[:, 0], (1, 2, 0))                     # (kh, kw, o)
    g1 = w1_hw[:, jnp.clip(kw, 0, K - 1), :]                       # (kh, wp, w, o)
    t1 = jnp.where(valid[None, :, :, None], g1, 0.0)
    t1 = t1.reshape(K1, L1).astype(jnp.bfloat16)
    b1k = jnp.tile(b1, W1).reshape(1, 1, L1).astype(jnp.float32)

    # conv2: pooled map lanes = g*OUT1 + c, only even g = 2*w2 carry data:
    # t2[kh*256 + g*OUT1 + c, w*OUT2 + o] = w2[o, c, kh, g//2 - w + PAD]
    g = jnp.arange(2 * W2)[:, None]
    w = jnp.arange(W2)[None, :]
    kw = g // 2 - w + PAD
    valid = ((g % 2) == 0) & (kw >= 0) & (kw < K)
    w2_t = jnp.transpose(w2, (2, 3, 1, 0))                         # (kh, kw, c, o)
    g2 = w2_t[:, jnp.clip(kw, 0, K - 1)]                           # (kh, g, w, c, o)
    t2 = jnp.where(valid[None, :, :, None, None], g2, 0.0)
    t2 = jnp.transpose(t2, (0, 1, 3, 2, 4)).reshape(K2, L2).astype(jnp.bfloat16)
    b2k = jnp.tile(b2, W2).reshape(1, 1, L2).astype(jnp.float32)

    # fc: kernel feature index = h3*256 + g*OUT2 + o (even g = 2*w3 carry data);
    # torch flattening order of the pooled map is (o, h3, w3).
    gw = jnp.arange(2 * W3)
    w3 = gw // 2
    fcw_r = fcw.reshape(NUM_CLASSES, OUT2, H3, W3)                 # (cls, o, h3, w3)
    A = jnp.transpose(fcw_r[:, :, :, w3], (2, 3, 1, 0))            # (h3, g, o, cls)
    A = jnp.where((gw % 2 == 0)[None, :, None, None], A, 0.0)
    fcwk = A.reshape(KF, NUM_CLASSES)
    fcwk = jnp.pad(fcwk, ((0, 0), (0, OUT_PAD - NUM_CLASSES))).astype(jnp.bfloat16)
    fcbk = jnp.pad(fcb, (0, OUT_PAD - NUM_CLASSES)).reshape(1, OUT_PAD).astype(jnp.float32)
    return t1, b1k, t2, b2k, fcwk, fcbk


def cnn_forward(x, params, block_n=128):
    """x: (N, 1, 16, 16) float32 in PyTorch NCHW convention. Returns (N, 10) logits."""
    N = x.shape[0]
    nb = max(8, min(block_n, _round_up(max(N, 1), 8)))   # clamp tile for tiny batches
    Np = _round_up(N, nb)

    # Raw zero-padded image: height-major, batch in sublanes, width in lanes.
    xp = jnp.pad(x[:, 0, :, :].astype(jnp.float32),
                 ((0, Np - N), (PAD, PAD), (PAD, PAD)))            # (Np, 20, 20)
    xk = jnp.transpose(xp, (1, 0, 2))                              # (20, Np, 20)

    t1, b1k, t2, b2k, fcwk, fcbk = _pack_weights(params)

    flops = 2 * Np * (H1 * W1 * K * K * OUT1
                      + H2 * W2 * K * K * OUT1 * OUT2
                      + H3 * W3 * OUT2 * NUM_CLASSES)
    bytes_accessed = (xk.size * 4 + Np * OUT_PAD * 4
                      + (t1.size + t2.size + fcwk.size) * 2
                      + (b1k.size + b2k.size + fcbk.size) * 4)

    out = pl.pallas_call(
        cnn_kernel,
        out_shape=jax.ShapeDtypeStruct((Np, OUT_PAD), jnp.float32),
        grid=(Np // nb,),
        in_specs=[
            pl.BlockSpec((WP1, nb, WP1), lambda b: (0, b, 0)),     # padded image tile
            pl.BlockSpec((K1, L1), lambda b: (0, 0)),              # conv1 Toeplitz (bf16)
            pl.BlockSpec((1, 1, L1), lambda b: (0, 0, 0)),         # bias1 (lane-packed)
            pl.BlockSpec((K2, L2), lambda b: (0, 0)),              # conv2 Toeplitz (bf16)
            pl.BlockSpec((1, 1, L2), lambda b: (0, 0, 0)),         # bias2 (lane-packed)
            pl.BlockSpec((KF, OUT_PAD), lambda b: (0, 0)),         # fc weights (padded)
            pl.BlockSpec((1, OUT_PAD), lambda b: (0, 0)),          # fc bias (padded)
        ],
        out_specs=pl.BlockSpec((nb, OUT_PAD), lambda b: (b, 0)),
        compiler_params=pltpu.CompilerParams(
            dimension_semantics=("parallel",),
            vmem_limit_bytes=48 * 1024 * 1024),
        cost_estimate=pl.CostEstimate(flops=flops, transcendentals=0,
                                      bytes_accessed=bytes_accessed),
    )(xk, t1, b1k, t2, b2k, fcwk, fcbk)
    return out[:N, :NUM_CLASSES]


def init_params(key):
    """Deterministic init mirroring PyTorch's default uniform(-1/sqrt(fan_in), ...)."""
    ks = jax.random.split(key, 6)

    def u(k, shape, fan_in):
        bound = 1.0 / np.sqrt(fan_in)
        return jax.random.uniform(k, shape, jnp.float32, -bound, bound)

    w1 = u(ks[0], (OUT1, 1, K, K), 1 * K * K)
    b1 = u(ks[1], (OUT1,), 1 * K * K)
    w2 = u(ks[2], (OUT2, OUT1, K, K), OUT1 * K * K)
    b2 = u(ks[3], (OUT2,), OUT1 * K * K)
    fcw = u(ks[4], (NUM_CLASSES, OUT2 * 4 * 4), OUT2 * 4 * 4)
    fcb = u(ks[5], (NUM_CLASSES,), OUT2 * 4 * 4)
    return (w1, b1, w2, b2, fcw, fcb)


def ref_forward(x, params):
    """Pure-JAX reference mirroring the PyTorch forward (NCHW)."""
    w1, b1, w2, b2, fcw, fcb = params
    N = x.shape[0]
    hp = jax.lax.Precision.HIGHEST
    xp = jnp.pad(x, ((0, 0), (0, 0), (PAD, PAD), (PAD, PAD)))
    z1 = jnp.zeros((N, OUT1, IMAGE_SIZE, IMAGE_SIZE), jnp.float32)
    for kh in range(K):
        for kw in range(K):
            patch = xp[:, :, kh:kh + IMAGE_SIZE, kw:kw + IMAGE_SIZE]   # (N,1,16,16)
            z1 = z1 + patch * w1[:, 0, kh, kw][None, :, None, None]
    a1 = jnp.maximum(z1 + b1[None, :, None, None], 0.0)
    p1 = jnp.max(a1.reshape(N, OUT1, 8, 2, 8, 2), axis=(3, 5))
    p1p = jnp.pad(p1, ((0, 0), (0, 0), (PAD, PAD), (PAD, PAD)))
    z2 = jnp.zeros((N, OUT2, 8, 8), jnp.float32)
    for kh in range(K):
        for kw in range(K):
            patch = p1p[:, :, kh:kh + 8, kw:kw + 8]                    # (N,16,8,8)
            z2 = z2 + jnp.einsum('nchw,oc->nohw', patch, w2[:, :, kh, kw],
                                 precision=hp)
    a2 = jnp.maximum(z2 + b2[None, :, None, None], 0.0)
    p2 = jnp.max(a2.reshape(N, OUT2, 4, 2, 4, 2), axis=(3, 5))
    flat = p2.reshape(N, OUT2 * 4 * 4)                                 # (C,H,W) flatten
    return jnp.dot(flat, fcw.T, precision=hp) + fcb[None, :]


if __name__ == "__main__":
    key = jax.random.PRNGKey(0)
    kx, kp = jax.random.split(key)
    N = 2
    x = jax.random.uniform(kx, (N, 1, IMAGE_SIZE, IMAGE_SIZE), jnp.float32)
    params = init_params(kp)

    logits = jax.block_until_ready(cnn_forward(x, params))

    expected = ref_forward(x, params)
    err = float(jnp.max(jnp.abs(logits - expected)))
    assert logits.shape == (N, NUM_CLASSES), logits.shape
    assert err < 3e-2, f"max abs error too large: {err}"
    print("KERNEL_OK")
</pallas_src>

<mosaic_0001>
module attributes {stable_mosaic.version = 11 : i64} {
  func.func @cnn_kernel(%arg0: i32, %arg1: memref<20x8x20xf32, #tpu.memory_space<vmem>>, %arg2: memref<100x256xbf16, #tpu.memory_space<vmem>>, %arg3: memref<1x1x256xf32, #tpu.memory_space<vmem>>, %arg4: memref<1280x256xbf16, #tpu.memory_space<vmem>>, %arg5: memref<1x1x256xf32, #tpu.memory_space<vmem>>, %arg6: memref<1024x128xbf16, #tpu.memory_space<vmem>>, %arg7: memref<1x128xf32, #tpu.memory_space<vmem>>, %arg8: memref<8x128xf32, #tpu.memory_space<vmem>>) attributes {dimension_semantics = [#tpu.dimension_semantics<parallel>], iteration_bounds = array<i64: 1>, scalar_prefetch = 0 : i64, scratch_operands = 0 : i64, tpu.core_type = #tpu.core_type<tc>, window_params = [{transform_indices = @transform_0, window_bounds = array<i64: 20, 8, 20>}, {pipeline_mode = #tpu.pipeline_mode<synchronous>, transform_indices = @transform_1, window_bounds = array<i64: 100, 256>}, {pipeline_mode = #tpu.pipeline_mode<synchronous>, transform_indices = @transform_2, window_bounds = array<i64: 1, 1, 256>}, {pipeline_mode = #tpu.pipeline_mode<synchronous>, transform_indices = @transform_3, window_bounds = array<i64: 1280, 256>}, {pipeline_mode = #tpu.pipeline_mode<synchronous>, transform_indices = @transform_4, window_bounds = array<i64: 1, 1, 256>}, {pipeline_mode = #tpu.pipeline_mode<synchronous>, transform_indices = @transform_5, window_bounds = array<i64: 1024, 128>}, {pipeline_mode = #tpu.pipeline_mode<synchronous>, transform_indices = @transform_6, window_bounds = array<i64: 1, 128>}, {transform_indices = @transform_7, window_bounds = array<i64: 8, 128>}]} {
    %c0 = arith.constant 0 : index
    %c0_0 = arith.constant 0 : index
    %c0_1 = arith.constant 0 : index
    %0 = vector.load %arg1[%c0, %c0_0, %c0_1] : memref<20x8x20xf32, #tpu.memory_space<vmem>>, vector<20x8x20xf32>
    %1 = arith.truncf %0 : vector<20x8x20xf32> to vector<20x8x20xbf16>
    %2 = vector.extract_strided_slice %1 {offsets = [0, 0, 0], sizes = [16, 8, 20], strides = [1, 1, 1]} : vector<20x8x20xbf16> to vector<16x8x20xbf16>
    %3 = vector.extract_strided_slice %1 {offsets = [1, 0, 0], sizes = [16, 8, 20], strides = [1, 1, 1]} : vector<20x8x20xbf16> to vector<16x8x20xbf16>
    %4 = vector.extract_strided_slice %1 {offsets = [2, 0, 0], sizes = [16, 8, 20], strides = [1, 1, 1]} : vector<20x8x20xbf16> to vector<16x8x20xbf16>
    %5 = vector.extract_strided_slice %1 {offsets = [3, 0, 0], sizes = [16, 8, 20], strides = [1, 1, 1]} : vector<20x8x20xbf16> to vector<16x8x20xbf16>
    %6 = vector.extract_strided_slice %1 {offsets = [4, 0, 0], sizes = [16, 8, 20], strides = [1, 1, 1]} : vector<20x8x20xbf16> to vector<16x8x20xbf16>
    %7 = tpu.concatenate %2, %3, %4, %5, %6 in 2 : vector<16x8x20xbf16>, vector<16x8x20xbf16>, vector<16x8x20xbf16>, vector<16x8x20xbf16>, vector<16x8x20xbf16> -> vector<16x8x100xbf16>
    %8 = vector.shape_cast %7 : vector<16x8x100xbf16> to vector<128x100xbf16>
    %c0_2 = arith.constant 0 : index
    %c0_3 = arith.constant 0 : index
    %9 = vector.load %arg2[%c0_2, %c0_3] : memref<100x256xbf16, #tpu.memory_space<vmem>>, vector<100x256xbf16>
    %cst = arith.constant dense<0.000000e+00> : vector<128x256xf32>
    %10 = tpu.matmul %8, %9, %cst {dimension_numbers = #tpu.dot_dimension_numbers<[1], [0], [0], [1], [0, 0, 1, 1], [], []>} : vector<128x100xbf16>, vector<100x256xbf16>, vector<128x256xf32> -> vector<128x256xf32>
    %11 = vector.shape_cast %10 : vector<128x256xf32> to vector<16x8x256xf32>
    %c0_4 = arith.constant 0 : index
    %c0_5 = arith.constant 0 : index
    %c0_6 = arith.constant 0 : index
    %12 = vector.load %arg3[%c0_4, %c0_5, %c0_6] : memref<1x1x256xf32, #tpu.memory_space<vmem>>, vector<1x1x256xf32>
    %13 = vector.broadcast %12 : vector<1x1x256xf32> to vector<16x8x256xf32>
    %14 = arith.addf %11, %13 : vector<16x8x256xf32>
    %cst_7 = arith.constant 0.000000e+00 : f32
    %15 = vector.broadcast %cst_7 : f32 to vector<16x8x256xf32>
    %16 = arith.maximumf %14, %15 : vector<16x8x256xf32>
    %17 = vector.shape_cast %16 : vector<16x8x256xf32> to vector<8x2x8x256xf32>
    %cst_8 = arith.constant dense<0xFF800000> : vector<8x8x256xf32>
    %18 = vector.multi_reduction <maximumf>, %17, %cst_8 [1] : vector<8x2x8x256xf32> to vector<8x8x256xf32>
    %19 = vector.extract_strided_slice %18 {offsets = [0, 0, 16], sizes = [8, 8, 240], strides = [1, 1, 1]} : vector<8x8x256xf32> to vector<8x8x240xf32>
    %cst_9 = arith.constant 0.000000e+00 : f32
    %20 = vector.broadcast %cst_9 : f32 to vector<8x8x16xf32>
    %21 = tpu.concatenate %19, %20 in 2 : vector<8x8x240xf32>, vector<8x8x16xf32> -> vector<8x8x256xf32>
    %22 = arith.maximumf %18, %21 : vector<8x8x256xf32>
    %23 = arith.truncf %22 : vector<8x8x256xf32> to vector<8x8x256xbf16>
    %cst_10 = arith.constant 0.000000e+00 : bf16
    %24 = vector.broadcast %cst_10 : bf16 to vector<2x8x256xbf16>
    %25 = tpu.concatenate %24, %23, %24 in 0 : vector<2x8x256xbf16>, vector<8x8x256xbf16>, vector<2x8x256xbf16> -> vector<12x8x256xbf16>
    %26 = vector.extract_strided_slice %25 {offsets = [0, 0, 0], sizes = [8, 8, 256], strides = [1, 1, 1]} : vector<12x8x256xbf16> to vector<8x8x256xbf16>
    %27 = vector.extract_strided_slice %25 {offsets = [1, 0, 0], sizes = [8, 8, 256], strides = [1, 1, 1]} : vector<12x8x256xbf16> to vector<8x8x256xbf16>
    %28 = vector.extract_strided_slice %25 {offsets = [2, 0, 0], sizes = [8, 8, 256], strides = [1, 1, 1]} : vector<12x8x256xbf16> to vector<8x8x256xbf16>
    %29 = vector.extract_strided_slice %25 {offsets = [3, 0, 0], sizes = [8, 8, 256], strides = [1, 1, 1]} : vector<12x8x256xbf16> to vector<8x8x256xbf16>
    %30 = vector.extract_strided_slice %25 {offsets = [4, 0, 0], sizes = [8, 8, 256], strides = [1, 1, 1]} : vector<12x8x256xbf16> to vector<8x8x256xbf16>
    %31 = tpu.concatenate %26, %27, %28, %29, %30 in 2 : vector<8x8x256xbf16>, vector<8x8x256xbf16>, vector<8x8x256xbf16>, vector<8x8x256xbf16>, vector<8x8x256xbf16> -> vector<8x8x1280xbf16>
    %32 = vector.shape_cast %31 : vector<8x8x1280xbf16> to vector<64x1280xbf16>
    %c0_11 = arith.constant 0 : index
    %c0_12 = arith.constant 0 : index
    %33 = vector.load %arg4[%c0_11, %c0_12] : memref<1280x256xbf16, #tpu.memory_space<vmem>>, vector<1280x256xbf16>
    %cst_13 = arith.constant dense<0.000000e+00> : vector<64x256xf32>
    %34 = tpu.matmul %32, %33, %cst_13 {dimension_numbers = #tpu.dot_dimension_numbers<[1], [0], [0], [1], [0, 0, 1, 1], [], []>} : vector<64x1280xbf16>, vector<1280x256xbf16>, vector<64x256xf32> -> vector<64x256xf32>
    %35 = vector.shape_cast %34 : vector<64x256xf32> to vector<8x8x256xf32>
    %c0_14 = arith.constant 0 : index
    %c0_15 = arith.constant 0 : index
    %c0_16 = arith.constant 0 : index
    %36 = vector.load %arg5[%c0_14, %c0_15, %c0_16] : memref<1x1x256xf32, #tpu.memory_space<vmem>>, vector<1x1x256xf32>
    %37 = vector.broadcast %36 : vector<1x1x256xf32> to vector<8x8x256xf32>
    %38 = arith.addf %35, %37 : vector<8x8x256xf32>
    %cst_17 = arith.constant 0.000000e+00 : f32
    %39 = vector.broadcast %cst_17 : f32 to vector<8x8x256xf32>
    %40 = arith.maximumf %38, %39 : vector<8x8x256xf32>
    %41 = vector.shape_cast %40 : vector<8x8x256xf32> to vector<4x2x8x256xf32>
    %cst_18 = arith.constant dense<0xFF800000> : vector<4x8x256xf32>
    %42 = vector.multi_reduction <maximumf>, %41, %cst_18 [1] : vector<4x2x8x256xf32> to vector<4x8x256xf32>
    %43 = vector.extract_strided_slice %42 {offsets = [0, 0, 32], sizes = [4, 8, 224], strides = [1, 1, 1]} : vector<4x8x256xf32> to vector<4x8x224xf32>
    %cst_19 = arith.constant 0.000000e+00 : f32
    %44 = vector.broadcast %cst_19 : f32 to vector<4x8x32xf32>
    %45 = tpu.concatenate %43, %44 in 2 : vector<4x8x224xf32>, vector<4x8x32xf32> -> vector<4x8x256xf32>
    %46 = arith.maximumf %42, %45 : vector<4x8x256xf32>
    %47 = arith.truncf %46 : vector<4x8x256xf32> to vector<4x8x256xbf16>
    %48 = vector.extract_strided_slice %47 {offsets = [0, 0, 0], sizes = [1, 8, 256], strides = [1, 1, 1]} : vector<4x8x256xbf16> to vector<1x8x256xbf16>
    %49 = vector.shape_cast %48 : vector<1x8x256xbf16> to vector<8x256xbf16>
    %50 = vector.extract_strided_slice %47 {offsets = [1, 0, 0], sizes = [1, 8, 256], strides = [1, 1, 1]} : vector<4x8x256xbf16> to vector<1x8x256xbf16>
    %51 = vector.shape_cast %50 : vector<1x8x256xbf16> to vector<8x256xbf16>
    %52 = vector.extract_strided_slice %47 {offsets = [2, 0, 0], sizes = [1, 8, 256], strides = [1, 1, 1]} : vector<4x8x256xbf16> to vector<1x8x256xbf16>
    %53 = vector.shape_cast %52 : vector<1x8x256xbf16> to vector<8x256xbf16>
    %54 = vector.extract_strided_slice %47 {offsets = [3, 0, 0], sizes = [1, 8, 256], strides = [1, 1, 1]} : vector<4x8x256xbf16> to vector<1x8x256xbf16>
    %55 = vector.shape_cast %54 : vector<1x8x256xbf16> to vector<8x256xbf16>
    %56 = tpu.concatenate %49, %51, %53, %55 in 1 : vector<8x256xbf16>, vector<8x256xbf16>, vector<8x256xbf16>, vector<8x256xbf16> -> vector<8x1024xbf16>
    %c0_20 = arith.constant 0 : index
    %c0_21 = arith.constant 0 : index
    %57 = vector.load %arg6[%c0_20, %c0_21] : memref<1024x128xbf16, #tpu.memory_space<vmem>>, vector<1024x128xbf16>
    %cst_22 = arith.constant dense<0.000000e+00> : vector<8x128xf32>
    %58 = tpu.matmul %56, %57, %cst_22 {dimension_numbers = #tpu.dot_dimension_numbers<[1], [0], [0], [1], [0, 0, 1, 1], [], []>} : vector<8x1024xbf16>, vector<1024x128xbf16>, vector<8x128xf32> -> vector<8x128xf32>
    %c0_23 = arith.constant 0 : index
    %c0_24 = arith.constant 0 : index
    %59 = vector.load %arg7[%c0_23, %c0_24] : memref<1x128xf32, #tpu.memory_space<vmem>>, vector<1x128xf32>
    %60 = vector.broadcast %59 : vector<1x128xf32> to vector<8x128xf32>
    %61 = arith.addf %58, %60 : vector<8x128xf32>
    %c0_25 = arith.constant 0 : index
    %c0_26 = arith.constant 0 : index
    %62 = vector.load %arg8[%c0_25, %c0_26] : memref<8x128xf32, #tpu.memory_space<vmem>>, vector<8x128xf32>
    tpu.vector_store %arg8[%c0_25, %c0_26], %61 {strides = array<i32>} : memref<8x128xf32, #tpu.memory_space<vmem>>, vector<8x128xf32>,
    return
  }
  func.func @transform_0(%arg0: i32) -> (i32, i32, i32) {
    %c0_i32 = arith.constant 0 : i32
    %c0_i32_0 = arith.constant 0 : i32
    %c0_i32_1 = arith.constant 0 : i32
    return %c0_i32, %arg0, %c0_i32_0 : i32, i32, i32
  }
  func.func @transform_1(%arg0: i32) -> (i32, i32) {
    %c0_i32 = arith.constant 0 : i32
    %c0_i32_0 = arith.constant 0 : i32
    %c0_i32_1 = arith.constant 0 : i32
    return %c0_i32, %c0_i32_0 : i32, i32
  }
  func.func @transform_2(%arg0: i32) -> (i32, i32, i32) {
    %c0_i32 = arith.constant 0 : i32
    %c0_i32_0 = arith.constant 0 : i32
    %c0_i32_1 = arith.constant 0 : i32
    %c0_i32_2 = arith.constant 0 : i32
    return %c0_i32, %c0_i32_0, %c0_i32_1 : i32, i32, i32
  }
  func.func @transform_3(%arg0: i32) -> (i32, i32) {
    %c0_i32 = arith.constant 0 : i32
    %c0_i32_0 = arith.constant 0 : i32
    %c0_i32_1 = arith.constant 0 : i32
    return %c0_i32, %c0_i32_0 : i32, i32
  }
  func.func @transform_4(%arg0: i32) -> (i32, i32, i32) {
    %c0_i32 = arith.constant 0 : i32
    %c0_i32_0 = arith.constant 0 : i32
    %c0_i32_1 = arith.constant 0 : i32
    %c0_i32_2 = arith.constant 0 : i32
    return %c0_i32, %c0_i32_0, %c0_i32_1 : i32, i32, i32
  }
  func.func @transform_5(%arg0: i32) -> (i32, i32) {
    %c0_i32 = arith.constant 0 : i32
    %c0_i32_0 = arith.constant 0 : i32
    %c0_i32_1 = arith.constant 0 : i32
    return %c0_i32, %c0_i32_0 : i32, i32
  }
  func.func @transform_6(%arg0: i32) -> (i32, i32) {
    %c0_i32 = arith.constant 0 : i32
    %c0_i32_0 = arith.constant 0 : i32
    %c0_i32_1 = arith.constant 0 : i32
    return %c0_i32, %c0_i32_0 : i32, i32
  }
  func.func @transform_7(%arg0: i32) -> (i32, i32) {
    %c0_i32 = arith.constant 0 : i32
    %c0_i32_0 = arith.constant 0 : i32
    return %arg0, %c0_i32 : i32, i32
  }
}

</mosaic_0001>

<llo_original>
// kernel: tpu_custom_call.1
$region0: #{tpu_custom_call.1}
  #allocation0 [shape = 'u32[]', space=smem, size = 0x4, offset = 0x4, fixed_abs, tag = 'smem constant byte address 0x4 - core index']
  #allocation1 [shape = 'u32[144,128]{1,0:T(1,128)}', space=vmem, size = 0x12000, scoped, tag = 'internal scratch']
  %s0 = inlined_call_operand.hbm [shape: f32[20,8,20], index: 0, kind: input, shape index: {}]
  %s1 = inlined_call_operand.hbm [shape: bf16[100,256], index: 1, kind: input, shape index: {}]
  %s2 = inlined_call_operand.vmem [shape: f32[1,1,256], index: 2, kind: input, shape index: {}]
  %s3 = inlined_call_operand.hbm [shape: bf16[1280,256], index: 3, kind: input, shape index: {}]
  %s4 = inlined_call_operand.vmem [shape: f32[1,1,256], index: 4, kind: input, shape index: {}]
  %s5 = inlined_call_operand.hbm [shape: bf16[1024,128], index: 5, kind: input, shape index: {}]
  %s6 = inlined_call_operand.vmem [shape: f32[1,128], index: 6, kind: input, shape index: {}]
  %s7 = inlined_call_operand.hbm [shape: f32[8,128], index: 7, kind: output, shape index: {}]
  %s8 = sld [smem:[#allocation0]]
  $region54: #{tpu_custom_call.1} parent=0
    _
  %s10 = ssub.s32 1, %s8
  %s11 = scalar_select 0, %s10, %s8
  $region1: #{tpu_custom_call.1} parent=0
    #allocation2 [shape = 'u8[81920]{0}', space=vmem, size = 0x14000, scoped, tag = 'input window, operand 0, single buffered']
    #allocation3 [shape = 's32[1]{0}', space=sflag, size = 0x4, scoped, tag = 'scoped memory for tpu_custom_call.1']
    #allocation4 [shape = 's32[1]{0}', space=sflag, size = 0x4, scoped, tag = 'scoped memory for tpu_custom_call.1']
    #allocation5 [shape = 'u8[53248]{0}', space=vmem, size = 0xd000, scoped, tag = 'input window, operand 1, single buffered']
    #allocation6 [shape = 's32[1]{0}', space=sflag, size = 0x4, scoped, tag = 'scoped memory for tpu_custom_call.1']
    #allocation7 [shape = 'u8[655360]{0}', space=vmem, size = 0xa0000, scoped, tag = 'input window, operand 3, single buffered']
    #allocation8 [shape = 'u8[262144]{0}', space=vmem, size = 0x40000, scoped, tag = 'input window, operand 5, single buffered']
    #allocation9 [shape = 's32[1]{0}', space=sflag, size = 0x4, scoped, tag = 'scoped memory for tpu_custom_call.1']
    #allocation10 [shape = 'u8[4096]{0}', space=vmem, size = 0x1000, scoped, tag = 'output window, operand 0, single buffered']
    %12 = vsyncpa [#allocation3], 0
    %13 = vsyncpa [#allocation6], 0
    %14 = vsyncpa [#allocation9], 0
    %15 = vsyncpa [#allocation4], 0
    // Predicated region
    $region2: #{tpu_custom_call.1} parent=1 // pred_check
      _
    $region3: #{tpu_custom_call.1} parent=1 // pred_check_branch
      %17 = sbr.rel (0) target = $region5
    $region4: #{tpu_custom_call.1} parent=1 // pred_region
      %s19 = ssub.s32 2560, 2560
      %20 = vsyncadd [#allocation3], %s19
      %s21 = sshll.u32 [#allocation2], 4
      %s22 = int_to_ptr.vmem [resolvable:$true] %s21
      %27 = dma.hbm_to_vmem [thread:$0]  %s0, 2560, %s22, [#allocation3], 128, 128, 8
    $region5: #{tpu_custom_call.1} parent=1 // pred_fallthru
      _
    // Predicated region
    $region6: #{tpu_custom_call.1} parent=1 // pred_check
      _
    $region7: #{tpu_custom_call.1} parent=1 // pred_check_branch
      %29 = sbr.rel (0) target = $region9
    $region8: #{tpu_custom_call.1} parent=1 // pred_region
      %s31 = ssub.s32 1664, 1664
      %32 = vsyncadd [#allocation6], %s31
      %s33 = sshll.u32 [#allocation5], 4
      %s34 = int_to_ptr.vmem [resolvable:$true] %s33
      %39 = dma.hbm_to_vmem [thread:$0]  %s1, 1664, %s34, [#allocation6], 128, 128, 8
    $region9: #{tpu_custom_call.1} parent=1 // pred_fallthru
      _
    // Predicated region
    $region10: #{tpu_custom_call.1} parent=1 // pred_check
      _
    $region11: #{tpu_custom_call.1} parent=1 // pred_check_branch
      %41 = sbr.rel (0) target = $region13
    $region12: #{tpu_custom_call.1} parent=1 // pred_region
      _
    $region13: #{tpu_custom_call.1} parent=1 // pred_fallthru
      _
    // Predicated region
    $region14: #{tpu_custom_call.1} parent=1 // pred_check
      _
    $region15: #{tpu_custom_call.1} parent=1 // pred_check_branch
      %43 = sbr.rel (0) target = $region17
    $region16: #{tpu_custom_call.1} parent=1 // pred_region
      %s45 = ssub.s32 20480, 20480
      %46 = vsyncadd [#allocation6], %s45
      %s47 = sshll.u32 [#allocation7], 4
      %s48 = int_to_ptr.vmem [resolvable:$true] %s47
      %53 = dma.hbm_to_vmem [thread:$0]  %s3, 20480, %s48, [#allocation6], 128, 128, 8
    $region17: #{tpu_custom_call.1} parent=1 // pred_fallthru
      _
    // Predicated region
    $region18: #{tpu_custom_call.1} parent=1 // pred_check
      _
    $region19: #{tpu_custom_call.1} parent=1 // pred_check_branch
      %55 = sbr.rel (0) target = $region21
    $region20: #{tpu_custom_call.1} parent=1 // pred_region
      _
    $region21: #{tpu_custom_call.1} parent=1 // pred_fallthru
      _
    // Predicated region
    $region22: #{tpu_custom_call.1} parent=1 // pred_check
      _
    $region23: #{tpu_custom_call.1} parent=1 // pred_check_branch
      %57 = sbr.rel (0) target = $region25
    $region24: #{tpu_custom_call.1} parent=1 // pred_region
      %s59 = ssub.s32 8192, 8192
      %60 = vsyncadd [#allocation9], %s59
      %s61 = sshll.u32 [#allocation8], 4
      %s62 = int_to_ptr.vmem [resolvable:$true] %s61
      %67 = dma.hbm_to_vmem [thread:$0]  %s5, 8192, %s62, [#allocation9], 64, 64, 4
    $region25: #{tpu_custom_call.1} parent=1 // pred_fallthru
      _
    // Predicated region
    $region26: #{tpu_custom_call.1} parent=1 // pred_check
      _
    $region27: #{tpu_custom_call.1} parent=1 // pred_check_branch
      %69 = sbr.rel (0) target = $region29
    $region28: #{tpu_custom_call.1} parent=1 // pred_region
      _
    $region29: #{tpu_custom_call.1} parent=1 // pred_fallthru
      _
    // Predicated region
    $region30: #{tpu_custom_call.1} parent=1 // pred_check
      _
    $region31: #{tpu_custom_call.1} parent=1 // pred_check_branch
      %71 = sbr.rel (0) target = $region33
    $region32: #{tpu_custom_call.1} parent=1 // pred_region
      %72 = dma.done [#allocation3], 2560
    $region33: #{tpu_custom_call.1} parent=1 // pred_fallthru
      _
    // Predicated region
    $region34: #{tpu_custom_call.1} parent=1 // pred_check
      _
    $region35: #{tpu_custom_call.1} parent=1 // pred_check_branch
      %74 = sbr.rel (0) target = $region37
    $region36: #{tpu_custom_call.1} parent=1 // pred_region
      %75 = dma.done [#allocation6], 1664
    $region37: #{tpu_custom_call.1} parent=1 // pred_fallthru
      _
    // Predicated region
    $region38: #{tpu_custom_call.1} parent=1 // pred_check
      _
    $region39: #{tpu_custom_call.1} parent=1 // pred_check_branch
      %77 = sbr.rel (0) target = $region41
    $region40: #{tpu_custom_call.1} parent=1 // pred_region
      %78 = dma.done [#allocation6], 20480
    $region41: #{tpu_custom_call.1} parent=1 // pred_fallthru
      _
    // Predicated region
    $region42: #{tpu_custom_call.1} parent=1 // pred_check
      _
    $region43: #{tpu_custom_call.1} parent=1 // pred_check_branch
      %80 = sbr.rel (0) target = $region45
    $region44: #{tpu_custom_call.1} parent=1 // pred_region
      %81 = dma.done [#allocation9], 8192
    $region45: #{tpu_custom_call.1} parent=1 // pred_fallthru
      _
    %v83 = vld [vmem:[#allocation2] sm:$0xff]
    %v84 = vld [vmem:[#allocation2 + $0x8] sm:$0xff]
    %v85 = vld [vmem:[#allocation2 + $0x10] sm:$0xff]
    %v86 = vld [vmem:[#allocation2 + $0x18] sm:$0xff]
    %v87 = vld [vmem:[#allocation2 + $0x20] sm:$0xff]
    %v88 = vld [vmem:[#allocation2 + $0x28] sm:$0xff]
    %v89 = vld [vmem:[#allocation2 + $0x30] sm:$0xff]
    %v90 = vld [vmem:[#allocation2 + $0x38] sm:$0xff]
    %v91 = vld [vmem:[#allocation2 + $0x40] sm:$0xff]
    %v92 = vld [vmem:[#allocation2 + $0x48] sm:$0xff]
    %v93 = vld [vmem:[#allocation2 + $0x50] sm:$0xff]
    %v94 = vld [vmem:[#allocation2 + $0x58] sm:$0xff]
    %v95 = vld [vmem:[#allocation2 + $0x60] sm:$0xff]
    %v96 = vld [vmem:[#allocation2 + $0x68] sm:$0xff]
    %v97 = vld [vmem:[#allocation2 + $0x70] sm:$0xff]
    %v98 = vld [vmem:[#allocation2 + $0x78] sm:$0xff]
    %v99 = vld [vmem:[#allocation2 + $0x80] sm:$0xff]
    %v100 = vld [vmem:[#allocation2 + $0x88] sm:$0xff]
    %v101 = vld [vmem:[#allocation2 + $0x90] sm:$0xff]
    %v102 = vld [vmem:[#allocation2 + $0x98] sm:$0xff]
    %v103 = vpack.c.bf16 %v83, %v83
    %v104 = vpack.c.bf16 %v84, %v84
    %v105 = vpack.c.bf16 %v85, %v85
    %v106 = vpack.c.bf16 %v86, %v86
    %v107 = vpack.c.bf16 %v87, %v87
    %v108 = vpack.c.bf16 %v88, %v88
    %v109 = vpack.c.bf16 %v89, %v89
    %v110 = vpack.c.bf16 %v90, %v90
    %v111 = vpack.c.bf16 %v91, %v91
    %v112 = vpack.c.bf16 %v92, %v92
    %v113 = vpack.c.bf16 %v93, %v93
    %v114 = vpack.c.bf16 %v94, %v94
    %v115 = vpack.c.bf16 %v95, %v95
    %v116 = vpack.c.bf16 %v96, %v96
    %v117 = vpack.c.bf16 %v97, %v97
    %v118 = vpack.c.bf16 %v98, %v98
    %v119 = vpack.c.bf16 %v99, %v99
    %v120 = vpack.c.bf16 %v100, %v100
    %v121 = vpack.c.bf16 %v101, %v101
    %v122 = vpack.c.bf16 %v102, %v102
    %139 = vrot.lane.b32.xlu0 %v104, 20
    %v140 = vpop.permute.xlu0 %139
    %141 = vrot.lane.b32.xlu0 %v105, 20
    %v142 = vpop.permute.xlu0 %141
    %143 = vrot.lane.b32.xlu0 %v106, 20
    %v144 = vpop.permute.xlu0 %143
    %145 = vrot.lane.b32.xlu0 %v107, 20
    %v146 = vpop.permute.xlu0 %145
    %147 = vrot.lane.b32.xlu0 %v108, 20
    %v148 = vpop.permute.xlu0 %147
    %149 = vrot.lane.b32.xlu0 %v109, 20
    %v150 = vpop.permute.xlu0 %149
    %151 = vrot.lane.b32.xlu0 %v110, 20
    %v152 = vpop.permute.xlu0 %151
    %153 = vrot.lane.b32.xlu0 %v111, 20
    %v154 = vpop.permute.xlu0 %153
    %155 = vrot.lane.b32.xlu0 %v112, 20
    %v156 = vpop.permute.xlu0 %155
    %157 = vrot.lane.b32.xlu0 %v113, 20
    %v158 = vpop.permute.xlu0 %157
    %159 = vrot.lane.b32.xlu0 %v114, 20
    %v160 = vpop.permute.xlu0 %159
    %161 = vrot.lane.b32.xlu0 %v115, 20
    %v162 = vpop.permute.xlu0 %161
    %163 = vrot.lane.b32.xlu0 %v116, 20
    %v164 = vpop.permute.xlu0 %163
    %165 = vrot.lane.b32.xlu0 %v117, 20
    %v166 = vpop.permute.xlu0 %165
    %167 = vrot.lane.b32.xlu0 %v118, 20
    %v168 = vpop.permute.xlu0 %167
    %169 = vrot.lane.b32.xlu0 %v119, 20
    %v170 = vpop.permute.xlu0 %169
    %172 = vrot.lane.b32.xlu0 %v105, 40
    %v173 = vpop.permute.xlu0 %172
    %174 = vrot.lane.b32.xlu0 %v106, 40
    %v175 = vpop.permute.xlu0 %174
    %176 = vrot.lane.b32.xlu0 %v107, 40
    %v177 = vpop.permute.xlu0 %176
    %178 = vrot.lane.b32.xlu0 %v108, 40
    %v179 = vpop.permute.xlu0 %178
    %180 = vrot.lane.b32.xlu0 %v109, 40
    %v181 = vpop.permute.xlu0 %180
    %182 = vrot.lane.b32.xlu0 %v110, 40
    %v183 = vpop.permute.xlu0 %182
    %184 = vrot.lane.b32.xlu0 %v111, 40
    %v185 = vpop.permute.xlu0 %184
    %186 = vrot.lane.b32.xlu0 %v112, 40
    %v187 = vpop.permute.xlu0 %186
    %188 = vrot.lane.b32.xlu0 %v113, 40
    %v189 = vpop.permute.xlu0 %188
    %190 = vrot.lane.b32.xlu0 %v114, 40
    %v191 = vpop.permute.xlu0 %190
    %192 = vrot.lane.b32.xlu0 %v115, 40
    %v193 = vpop.permute.xlu0 %192
    %194 = vrot.lane.b32.xlu0 %v116, 40
    %v195 = vpop.permute.xlu0 %194
    %196 = vrot.lane.b32.xlu0 %v117, 40
    %v197 = vpop.permute.xlu0 %196
    %198 = vrot.lane.b32.xlu0 %v118, 40
    %v199 = vpop.permute.xlu0 %198
    %200 = vrot.lane.b32.xlu0 %v119, 40
    %v201 = vpop.permute.xlu0 %200
    %202 = vrot.lane.b32.xlu0 %v120, 40
    %v203 = vpop.permute.xlu0 %202
    %205 = vrot.lane.b32.xlu0 %v106, 60
    %v206 = vpop.permute.xlu0 %205
    %207 = vrot.lane.b32.xlu0 %v107, 60
    %v208 = vpop.permute.xlu0 %207
    %209 = vrot.lane.b32.xlu0 %v108, 60
    %v210 = vpop.permute.xlu0 %209
    %211 = vrot.lane.b32.xlu0 %v109, 60
    %v212 = vpop.permute.xlu0 %211
    %213 = vrot.lane.b32.xlu0 %v110, 60
    %v214 = vpop.permute.xlu0 %213
    %215 = vrot.lane.b32.xlu0 %v111, 60
    %v216 = vpop.permute.xlu0 %215
    %217 = vrot.lane.b32.xlu0 %v112, 60
    %v218 = vpop.permute.xlu0 %217
    %219 = vrot.lane.b32.xlu0 %v113, 60
    %v220 = vpop.permute.xlu0 %219
    %221 = vrot.lane.b32.xlu0 %v114, 60
    %v222 = vpop.permute.xlu0 %221
    %223 = vrot.lane.b32.xlu0 %v115, 60
    %v224 = vpop.permute.xlu0 %223
    %225 = vrot.lane.b32.xlu0 %v116, 60
    %v226 = vpop.permute.xlu0 %225
    %227 = vrot.lane.b32.xlu0 %v117, 60
    %v228 = vpop.permute.xlu0 %227
    %229 = vrot.lane.b32.xlu0 %v118, 60
    %v230 = vpop.permute.xlu0 %229
    %231 = vrot.lane.b32.xlu0 %v119, 60
    %v232 = vpop.permute.xlu0 %231
    %233 = vrot.lane.b32.xlu0 %v120, 60
    %v234 = vpop.permute.xlu0 %233
    %235 = vrot.lane.b32.xlu0 %v121, 60
    %v236 = vpop.permute.xlu0 %235
    %238 = vrot.lane.b32.xlu0 %v107, 80
    %v239 = vpop.permute.xlu0 %238
    %240 = vrot.lane.b32.xlu0 %v108, 80
    %v241 = vpop.permute.xlu0 %240
    %242 = vrot.lane.b32.xlu0 %v109, 80
    %v243 = vpop.permute.xlu0 %242
    %244 = vrot.lane.b32.xlu0 %v110, 80
    %v245 = vpop.permute.xlu0 %244
    %246 = vrot.lane.b32.xlu0 %v111, 80
    %v247 = vpop.permute.xlu0 %246
    %248 = vrot.lane.b32.xlu0 %v112, 80
    %v249 = vpop.permute.xlu0 %248
    %250 = vrot.lane.b32.xlu0 %v113, 80
    %v251 = vpop.permute.xlu0 %250
    %252 = vrot.lane.b32.xlu0 %v114, 80
    %v253 = vpop.permute.xlu0 %252
    %254 = vrot.lane.b32.xlu0 %v115, 80
    %v255 = vpop.permute.xlu0 %254
    %256 = vrot.lane.b32.xlu0 %v116, 80
    %v257 = vpop.permute.xlu0 %256
    %258 = vrot.lane.b32.xlu0 %v117, 80
    %v259 = vpop.permute.xlu0 %258
    %260 = vrot.lane.b32.xlu0 %v118, 80
    %v261 = vpop.permute.xlu0 %260
    %262 = vrot.lane.b32.xlu0 %v119, 80
    %v263 = vpop.permute.xlu0 %262
    %264 = vrot.lane.b32.xlu0 %v120, 80
    %v265 = vpop.permute.xlu0 %264
    %266 = vrot.lane.b32.xlu0 %v121, 80
    %v267 = vpop.permute.xlu0 %266
    %268 = vrot.lane.b32.xlu0 %v122, 80
    %v269 = vpop.permute.xlu0 %268
    %vm270 = vcmask 162816
    %v273 = vsel %vm270, %v103, %v140
    %v276 = vsel %vm270, %v104, %v142
    %v279 = vsel %vm270, %v105, %v144
    %v282 = vsel %vm270, %v106, %v146
    %v285 = vsel %vm270, %v107, %v148
    %v288 = vsel %vm270, %v108, %v150
    %v291 = vsel %vm270, %v109, %v152
    %v294 = vsel %vm270, %v110, %v154
    %v297 = vsel %vm270, %v111, %v156
    %v300 = vsel %vm270, %v112, %v158
    %v303 = vsel %vm270, %v113, %v160
    %v306 = vsel %vm270, %v114, %v162
    %v309 = vsel %vm270, %v115, %v164
    %v312 = vsel %vm270, %v116, %v166
    %v315 = vsel %vm270, %v117, %v168
    %v318 = vsel %vm270, %v118, %v170
    %vm319 = vcmask 326656
    %v321 = vsel %vm319, %v273, %v173
    %v323 = vsel %vm319, %v276, %v175
    %v325 = vsel %vm319, %v279, %v177
    %v327 = vsel %vm319, %v282, %v179
    %v329 = vsel %vm319, %v285, %v181
    %v331 = vsel %vm319, %v288, %v183
    %v333 = vsel %vm319, %v291, %v185
    %v335 = vsel %vm319, %v294, %v187
    %v337 = vsel %vm319, %v297, %v189
    %v339 = vsel %vm319, %v300, %v191
    %v341 = vsel %vm319, %v303, %v193
    %v343 = vsel %vm319, %v306, %v195
    %v345 = vsel %vm319, %v309, %v197
    %v347 = vsel %vm319, %v312, %v199
    %v349 = vsel %vm319, %v315, %v201
    %v351 = vsel %vm319, %v318, %v203
    %vm352 = vcmask 490496
    %v354 = vsel %vm352, %v321, %v206
    %v356 = vsel %vm352, %v323, %v208
    %v358 = vsel %vm352, %v325, %v210
    %v360 = vsel %vm352, %v327, %v212
    %v362 = vsel %vm352, %v329, %v214
    %v364 = vsel %vm352, %v331, %v216
    %v366 = vsel %vm352, %v333, %v218
    %v368 = vsel %vm352, %v335, %v220
    %v370 = vsel %vm352, %v337, %v222
    %v372 = vsel %vm352, %v339, %v224
    %v374 = vsel %vm352, %v341, %v226
    %v376 = vsel %vm352, %v343, %v228
    %v378 = vsel %vm352, %v345, %v230
    %v380 = vsel %vm352, %v347, %v232
    %v382 = vsel %vm352, %v349, %v234
    %v384 = vsel %vm352, %v351, %v236
    %vm385 = vcmask 654336
    %v387 = vsel %vm385, %v354, %v239
    %v389 = vsel %vm385, %v356, %v241
    %v391 = vsel %vm385, %v358, %v243
    %v393 = vsel %vm385, %v360, %v245
    %v395 = vsel %vm385, %v362, %v247
    %v397 = vsel %vm385, %v364, %v249
    %v399 = vsel %vm385, %v366, %v251
    %v401 = vsel %vm385, %v368, %v253
    %v403 = vsel %vm385, %v370, %v255
    %v405 = vsel %vm385, %v372, %v257
    %v407 = vsel %vm385, %v374, %v259
    %v409 = vsel %vm385, %v376, %v261
    %v411 = vsel %vm385, %v378, %v263
    %v413 = vsel %vm385, %v380, %v265
    %v415 = vsel %vm385, %v382, %v267
    %v417 = vsel %vm385, %v384, %v269
    %v418 = vld [vmem:[#allocation5] sm:$0xff]
    %v419 = vld [vmem:[#allocation5 + $0x8] sm:$0xff]
    %v420 = vld [vmem:[#allocation5 + $0x10] sm:$0xff]
    %v421 = vld [vmem:[#allocation5 + $0x18] sm:$0xff]
    %v422 = vld [vmem:[#allocation5 + $0x20] sm:$0xff]
    %v423 = vld [vmem:[#allocation5 + $0x28] sm:$0xff]
    %v424 = vld [vmem:[#allocation5 + $0x30] sm:$0xff]
    %v425 = vld [vmem:[#allocation5 + $0x38] sm:$0xff]
    %v426 = vld [vmem:[#allocation5 + $0x40] sm:$0xff]
    %v427 = vld [vmem:[#allocation5 + $0x48] sm:$0xff]
    %v428 = vld [vmem:[#allocation5 + $0x50] sm:$0xff]
    %v429 = vld [vmem:[#allocation5 + $0x58] sm:$0xff]
    %v430 = vld [vmem:[#allocation5 + $0x60] sm:$0x33]
    %v447 = vunpack.c.l.b16 %v387
    %v448 = vunpack.c.l.b16 %v389
    %v449 = vunpack.c.l.b16 %v391
    %v450 = vunpack.c.l.b16 %v393
    %v451 = vunpack.c.l.b16 %v395
    %v452 = vunpack.c.l.b16 %v397
    %v453 = vunpack.c.l.b16 %v399
    %v454 = vunpack.c.l.b16 %v401
    %v455 = vunpack.c.l.b16 %v403
    %v456 = vunpack.c.l.b16 %v405
    %v457 = vunpack.c.l.b16 %v407
    %v458 = vunpack.c.l.b16 %v409
    %v459 = vunpack.c.l.b16 %v411
    %v460 = vunpack.c.l.b16 %v413
    %v461 = vunpack.c.l.b16 %v415
    %v462 = vunpack.c.l.b16 %v417
    %v463 = vpack.c.b16 %v448, %v447
    %v464 = vpack.c.b16 %v450, %v449
    %v465 = vpack.c.b16 %v452, %v451
    %v466 = vpack.c.b16 %v454, %v453
    %v467 = vpack.c.b16 %v456, %v455
    %v468 = vpack.c.b16 %v458, %v457
    %v469 = vpack.c.b16 %v460, %v459
    %v470 = vpack.c.b16 %v462, %v461
    %v484 = vunpack.c.l.b16 %v418
    %v485 = vunpack.c.h.b16 %v418
    %v486 = vunpack.c.l.b16 %v419
    %v487 = vunpack.c.h.b16 %v419
    %v488 = vunpack.c.l.b16 %v420
    %v489 = vunpack.c.h.b16 %v420
    %v490 = vunpack.c.l.b16 %v421
    %v491 = vunpack.c.h.b16 %v421
    %v492 = vunpack.c.l.b16 %v422
    %v493 = vunpack.c.h.b16 %v422
    %v494 = vunpack.c.l.b16 %v423
    %v495 = vunpack.c.h.b16 %v423
    %v496 = vunpack.c.l.b16 %v424
    %v497 = vunpack.c.h.b16 %v424
    %v498 = vunpack.c.l.b16 %v425
    %v499 = vunpack.c.h.b16 %v425
    %v500 = vunpack.c.l.b16 %v426
    %v501 = vunpack.c.h.b16 %v426
    %v502 = vunpack.c.l.b16 %v427
    %v503 = vunpack.c.h.b16 %v427
    %v504 = vunpack.c.l.b16 %v428
    %v505 = vunpack.c.h.b16 %v428
    %v506 = vunpack.c.l.b16 %v429
    %v507 = vunpack.c.h.b16 %v429
    %v508 = vunpack.c.l.b16 %v430
    %v509 = vunpack.c.h.b16 %v430
    %v510 = vpack.c.b16 %v486, %v484
    %v511 = vpack.c.b16 %v487, %v485
    %v512 = vpack.c.b16 %v490, %v488
    %v513 = vpack.c.b16 %v491, %v489
    %v514 = vpack.c.b16 %v494, %v492
    %v515 = vpack.c.b16 %v495, %v493
    %v516 = vpack.c.b16 %v498, %v496
    %v517 = vpack.c.b16 %v499, %v497
    %v518 = vpack.c.b16 %v502, %v500
    %v519 = vpack.c.b16 %v503, %v501
    %v520 = vpack.c.b16 %v506, %v504
    %v521 = vpack.c.b16 %v507, %v505
    %v522 = vpack.c.b16 %v508, %v508
    %v523 = vpack.c.b16 %v509, %v509
    %vm536 = vcmask 818176
    %v538 = vsel %vm536, %v463, 0
    %v541 = vsel %vm536, %v464, 0
    %v544 = vsel %vm536, %v465, 0
    %v547 = vsel %vm536, %v466, 0
    %v550 = vsel %vm536, %v467, 0
    %v553 = vsel %vm536, %v468, 0
    %v556 = vsel %vm536, %v469, 0
    %v559 = vsel %vm536, %v470, 0
    %vm561 = vcmask 1041408
    %v563 = vsel %vm561, %v522, 0
    %v566 = vsel %vm561, %v523, 0
    %568 = vmatprep.subr.bf16.mxu0 %v511
    %569 = vmatpush1.bf16.msra.mxu0 %v510
    %570 = vmatprep.subr.bf16.mxu0 %v513
    %571 = vmatpush1.bf16.msra.mxu0 %v512
    %572 = vmatprep.subr.bf16.mxu0 %v515
    %573 = vmatpush1.bf16.msra.mxu0 %v514
    %574 = vmatprep.subr.bf16.mxu0 %v517
    %575 = vmatpush1.bf16.msra.mxu0 %v516
    %576 = vmatprep.subr.bf16.mxu0 %v519
    %577 = vmatpush1.bf16.msra.mxu0 %v518
    %578 = vmatprep.subr.bf16.mxu0 %v521
    %579 = vmatpush1.bf16.msra.mxu0 %v520
    %580 = vmatprep.subr.bf16.mxu0 %v566
    %581 = vmatpush1.bf16.msra.mxu0 %v563
    %582 = vmatprep.subr.bf16.mxu0 0
    %583 = vmatpush1.bf16.msra.mxu0 0
    %584 = vmatprep.subr.bf16.mxu0 0
    %585 = vmatpush1.bf16.msra.mxu0 0
    %586 = vmatprep.subr.bf16.mxu0 0
    %587 = vmatpush1.bf16.msra.mxu0 0
    %588 = vmatprep.subr.bf16.mxu0 0
    %589 = vmatpush1.bf16.msra.mxu0 0
    %590 = vmatprep.subr.bf16.mxu0 0
    %591 = vmatpush1.bf16.msra.mxu0 0
    %592 = vmatprep.subr.bf16.mxu0 0
    %593 = vmatpush1.bf16.msra.mxu0 0
    %594 = vmatprep.subr.bf16.mxu0 0
    %595 = vmatpush1.bf16.msra.mxu0 0
    %596 = vmatprep.subr.bf16.mxu0 0
    %597 = vmatpush1.bf16.msra.mxu0 0
    %598 = vmatprep.subr.bf16.mxu0 0
    %599 = vmatpush1.bf16.msra.mxu0 0
    %600 = vmatprep.mubr.bf16.mxu0 0
    %601 = vmatmul.mubr.bf16.gmra.mrb[0].mxu0 %v538
    %v602 = vpop.f32.mrb[0].mxu0
    %v603 = vadd.f32 0.0, %v602
    %v604 = vpop.f32.mrb[0].mxu0
    %v605 = vadd.f32 0.0, %v604
    %v606 = vpop.f32.mrb[0].mxu0
    %v607 = vadd.f32 0.0, %v606
    %v608 = vpop.f32.mrb[0].mxu0
    %v609 = vadd.f32 0.0, %v608
    %610 = vmatprep.mubr.bf16.mxu0 0
    %611 = vmatmul.mubr.bf16.gmra.mrb[0].mxu0 %v541
    %v612 = vpop.f32.mrb[0].mxu0
    %v613 = vadd.f32 0.0, %v612
    %v614 = vpop.f32.mrb[0].mxu0
    %v615 = vadd.f32 0.0, %v614
    %v616 = vpop.f32.mrb[0].mxu0
    %v617 = vadd.f32 0.0, %v616
    %v618 = vpop.f32.mrb[0].mxu0
    %v619 = vadd.f32 0.0, %v618
    %620 = vmatprep.mubr.bf16.mxu0 0
    %621 = vmatmul.mubr.bf16.gmra.mrb[0].mxu0 %v544
    %v622 = vpop.f32.mrb[0].mxu0
    %v623 = vadd.f32 0.0, %v622
    %v624 = vpop.f32.mrb[0].mxu0
    %v625 = vadd.f32 0.0, %v624
    %v626 = vpop.f32.mrb[0].mxu0
    %v627 = vadd.f32 0.0, %v626
    %v628 = vpop.f32.mrb[0].mxu0
    %v629 = vadd.f32 0.0, %v628
    %630 = vmatprep.mubr.bf16.mxu0 0
    %631 = vmatmul.mubr.bf16.gmra.mrb[0].mxu0 %v547
    %v632 = vpop.f32.mrb[0].mxu0
    %v633 = vadd.f32 0.0, %v632
    %v634 = vpop.f32.mrb[0].mxu0
    %v635 = vadd.f32 0.0, %v634
    %v636 = vpop.f32.mrb[0].mxu0
    %v637 = vadd.f32 0.0, %v636
    %v638 = vpop.f32.mrb[0].mxu0
    %v639 = vadd.f32 0.0, %v638
    %640 = vmatprep.mubr.bf16.mxu0 0
    %641 = vmatmul.mubr.bf16.gmra.mrb[0].mxu0 %v550
    %v642 = vpop.f32.mrb[0].mxu0
    %v643 = vadd.f32 0.0, %v642
    %v644 = vpop.f32.mrb[0].mxu0
    %v645 = vadd.f32 0.0, %v644
    %v646 = vpop.f32.mrb[0].mxu0
    %v647 = vadd.f32 0.0, %v646
    %v648 = vpop.f32.mrb[0].mxu0
    %v649 = vadd.f32 0.0, %v648
    %650 = vmatprep.mubr.bf16.mxu0 0
    %651 = vmatmul.mubr.bf16.gmra.mrb[0].mxu0 %v553
    %v652 = vpop.f32.mrb[0].mxu0
    %v653 = vadd.f32 0.0, %v652
    %v654 = vpop.f32.mrb[0].mxu0
    %v655 = vadd.f32 0.0, %v654
    %v656 = vpop.f32.mrb[0].mxu0
    %v657 = vadd.f32 0.0, %v656
    %v658 = vpop.f32.mrb[0].mxu0
    %v659 = vadd.f32 0.0, %v658
    %660 = vmatprep.mubr.bf16.mxu0 0
    %661 = vmatmul.mubr.bf16.gmra.mrb[0].mxu0 %v556
    %v662 = vpop.f32.mrb[0].mxu0
    %v663 = vadd.f32 0.0, %v662
    %v664 = vpop.f32.mrb[0].mxu0
    %v665 = vadd.f32 0.0, %v664
    %v666 = vpop.f32.mrb[0].mxu0
    %v667 = vadd.f32 0.0, %v666
    %v668 = vpop.f32.mrb[0].mxu0
    %v669 = vadd.f32 0.0, %v668
    %670 = vmatprep.mubr.bf16.mxu0 0
    %671 = vmatmul.mubr.bf16.gmra.mrb[0].mxu0 %v559
    %v672 = vpop.f32.mrb[0].mxu0
    %v673 = vadd.f32 0.0, %v672
    %v674 = vpop.f32.mrb[0].mxu0
    %v675 = vadd.f32 0.0, %v674
    %v676 = vpop.f32.mrb[0].mxu0
    %v677 = vadd.f32 0.0, %v676
    %v678 = vpop.f32.mrb[0].mxu0
    %v679 = vadd.f32 0.0, %v678
    %680 = vdwg.mxu0
    %v681 = vld [vmem:[%s2] sm:$0x3]
    %v683 = vlaneseq
    %v684 = vshrl.u32 %v683, 7
    %v685 = vsub.s32 0, %v684
    %v686 = vrot.slane %v681, %v685
    %v687 = vlaneseq
    %v688 = vshrl.u32 %v687, 7
    %v689 = vsub.s32 1, %v688
    %v690 = vrot.slane %v681, %v689
    %v693 = vadd.f32 %v603, %v686
    %v694 = vadd.f32 %v605, %v690
    %v695 = vadd.f32 %v607, %v686
    %v696 = vadd.f32 %v609, %v690
    %v697 = vadd.f32 %v613, %v686
    %v698 = vadd.f32 %v615, %v690
    %v699 = vadd.f32 %v617, %v686
    %v700 = vadd.f32 %v619, %v690
    %v701 = vadd.f32 %v623, %v686
    %v702 = vadd.f32 %v625, %v690
    %v703 = vadd.f32 %v627, %v686
    %v704 = vadd.f32 %v629, %v690
    %v705 = vadd.f32 %v633, %v686
    %v706 = vadd.f32 %v635, %v690
    %v707 = vadd.f32 %v637, %v686
    %v708 = vadd.f32 %v639, %v690
    %v709 = vadd.f32 %v643, %v686
    %v710 = vadd.f32 %v645, %v690
    %v711 = vadd.f32 %v647, %v686
    %v712 = vadd.f32 %v649, %v690
    %v713 = vadd.f32 %v653, %v686
    %v714 = vadd.f32 %v655, %v690
    %v715 = vadd.f32 %v657, %v686
    %v716 = vadd.f32 %v659, %v690
    %v717 = vadd.f32 %v663, %v686
    %v718 = vadd.f32 %v665, %v690
    %v719 = vadd.f32 %v667, %v686
    %v720 = vadd.f32 %v669, %v690
    %v721 = vadd.f32 %v673, %v686
    %v722 = vadd.f32 %v675, %v690
    %v723 = vadd.f32 %v677, %v686
    %v724 = vadd.f32 %v679, %v690
    %v725 = vmax.f32 %v693, 0.0
    %v726 = vmax.f32 %v694, 0.0
    %v727 = vmax.f32 %v695, 0.0
    %v728 = vmax.f32 %v696, 0.0
    %v729 = vmax.f32 %v697, 0.0
    %v730 = vmax.f32 %v698, 0.0
    %v731 = vmax.f32 %v699, 0.0
    %v732 = vmax.f32 %v700, 0.0
    %v733 = vmax.f32 %v701, 0.0
    %v734 = vmax.f32 %v702, 0.0
    %v735 = vmax.f32 %v703, 0.0
    %v736 = vmax.f32 %v704, 0.0
    %v737 = vmax.f32 %v705, 0.0
    %v738 = vmax.f32 %v706, 0.0
    %v739 = vmax.f32 %v707, 0.0
    %v740 = vmax.f32 %v708, 0.0
    %v741 = vmax.f32 %v709, 0.0
    %v742 = vmax.f32 %v710, 0.0
    %v743 = vmax.f32 %v711, 0.0
    %v744 = vmax.f32 %v712, 0.0
    %v745 = vmax.f32 %v713, 0.0
    %v746 = vmax.f32 %v714, 0.0
    %v747 = vmax.f32 %v715, 0.0
    %v748 = vmax.f32 %v716, 0.0
    %v749 = vmax.f32 %v717, 0.0
    %v750 = vmax.f32 %v718, 0.0
    %v751 = vmax.f32 %v719, 0.0
    %v752 = vmax.f32 %v720, 0.0
    %v753 = vmax.f32 %v721, 0.0
    %v754 = vmax.f32 %v722, 0.0
    %v755 = vmax.f32 %v723, 0.0
    %v756 = vmax.f32 %v724, 0.0
    %v757 = vmax.f32 %v725, %v727
    %v758 = vmax.f32 %v726, %v728
    %v759 = vmax.f32 %v729, %v731
    %v760 = vmax.f32 %v730, %v732
    %v761 = vmax.f32 %v733, %v735
    %v762 = vmax.f32 %v734, %v736
    %v763 = vmax.f32 %v737, %v739
    %v764 = vmax.f32 %v738, %v740
    %v765 = vmax.f32 %v741, %v743
    %v766 = vmax.f32 %v742, %v744
    %v767 = vmax.f32 %v745, %v747
    %v768 = vmax.f32 %v746, %v748
    %v769 = vmax.f32 %v749, %v751
    %v770 = vmax.f32 %v750, %v752
    %v771 = vmax.f32 %v753, %v755
    %v772 = vmax.f32 %v754, %v756
    %789 = vrot.lane.b32.xlu0 %v757, 112
    %v790 = vpop.permute.xlu0 %789
    %791 = vrot.lane.b32.xlu0 %v758, 112
    %v792 = vpop.permute.xlu0 %791
    %793 = vrot.lane.b32.xlu0 %v759, 112
    %v794 = vpop.permute.xlu0 %793
    %795 = vrot.lane.b32.xlu0 %v760, 112
    %v796 = vpop.permute.xlu0 %795
    %797 = vrot.lane.b32.xlu0 %v761, 112
    %v798 = vpop.permute.xlu0 %797
    %799 = vrot.lane.b32.xlu0 %v762, 112
    %v800 = vpop.permute.xlu0 %799
    %801 = vrot.lane.b32.xlu0 %v763, 112
    %v802 = vpop.permute.xlu0 %801
    %803 = vrot.lane.b32.xlu0 %v764, 112
    %v804 = vpop.permute.xlu0 %803
    %805 = vrot.lane.b32.xlu0 %v765, 112
    %v806 = vpop.permute.xlu0 %805
    %807 = vrot.lane.b32.xlu0 %v766, 112
    %v808 = vpop.permute.xlu0 %807
    %809 = vrot.lane.b32.xlu0 %v767, 112
    %v810 = vpop.permute.xlu0 %809
    %811 = vrot.lane.b32.xlu0 %v768, 112
    %v812 = vpop.permute.xlu0 %811
    %813 = vrot.lane.b32.xlu0 %v769, 112
    %v814 = vpop.permute.xlu0 %813
    %815 = vrot.lane.b32.xlu0 %v770, 112
    %v816 = vpop.permute.xlu0 %815
    %817 = vrot.lane.b32.xlu0 %v771, 112
    %v818 = vpop.permute.xlu0 %817
    %819 = vrot.lane.b32.xlu0 %v772, 112
    %v820 = vpop.permute.xlu0 %819
    %vm821 = vcmask 916480
    %v822 = vsel %vm821, %v790, %v792
    %v823 = vsel %vm821, %v794, %v796
    %v824 = vsel %vm821, %v798, %v800
    %v825 = vsel %vm821, %v802, %v804
    %v826 = vsel %vm821, %v806, %v808
    %v827 = vsel %vm821, %v810, %v812
    %v828 = vsel %vm821, %v814, %v816
    %v829 = vsel %vm821, %v818, %v820
    %v846 = vsel %vm821, %v792, 0.0
    %v847 = vsel %vm821, %v796, 0.0
    %v848 = vsel %vm821, %v800, 0.0
    %v849 = vsel %vm821, %v804, 0.0
    %v850 = vsel %vm821, %v808, 0.0
    %v851 = vsel %vm821, %v812, 0.0
    %v852 = vsel %vm821, %v816, 0.0
    %v853 = vsel %vm821, %v820, 0.0
    %v854 = vmax.f32 %v757, %v822
    %v855 = vmax.f32 %v758, %v846
    %v856 = vmax.f32 %v759, %v823
    %v857 = vmax.f32 %v760, %v847
    %v858 = vmax.f32 %v761, %v824
    %v859 = vmax.f32 %v762, %v848
    %v860 = vmax.f32 %v763, %v825
    %v861 = vmax.f32 %v764, %v849
    %v862 = vmax.f32 %v765, %v826
    %v863 = vmax.f32 %v766, %v850
    %v864 = vmax.f32 %v767, %v827
    %v865 = vmax.f32 %v768, %v851
    %v866 = vmax.f32 %v769, %v828
    %v867 = vmax.f32 %v770, %v852
    %v868 = vmax.f32 %v771, %v829
    %v869 = vmax.f32 %v772, %v853
    %v870 = vpack.c.bf16 %v854, %v854
    %v871 = vpack.c.bf16 %v855, %v855
    %v872 = vpack.c.bf16 %v856, %v856
    %v873 = vpack.c.bf16 %v857, %v857
    %v874 = vpack.c.bf16 %v858, %v858
    %v875 = vpack.c.bf16 %v859, %v859
    %v876 = vpack.c.bf16 %v860, %v860
    %v877 = vpack.c.bf16 %v861, %v861
    %v878 = vpack.c.bf16 %v862, %v862
    %v879 = vpack.c.bf16 %v863, %v863
    %v880 = vpack.c.bf16 %v864, %v864
    %v881 = vpack.c.bf16 %v865, %v865
    %v882 = vpack.c.bf16 %v866, %v866
    %v883 = vpack.c.bf16 %v867, %v867
    %v884 = vpack.c.bf16 %v868, %v868
    %v885 = vpack.c.bf16 %v869, %v869
    %v903 = vunpack.c.l.b16 0
    %v904 = vunpack.c.l.b16 %v870
    %v905 = vunpack.c.l.b16 %v871
    %v906 = vunpack.c.l.b16 %v872
    %v907 = vunpack.c.l.b16 %v873
    %v908 = vunpack.c.l.b16 %v874
    %v909 = vunpack.c.l.b16 %v875
    %v910 = vunpack.c.l.b16 %v876
    %v911 = vunpack.c.l.b16 %v877
    %v912 = vunpack.c.l.b16 %v878
    %v913 = vunpack.c.l.b16 %v879
    %v914 = vunpack.c.l.b16 %v880
    %v915 = vunpack.c.l.b16 %v881
    %v916 = vunpack.c.l.b16 %v882
    %v917 = vunpack.c.l.b16 %v883
    %v918 = vunpack.c.l.b16 %v884
    %v919 = vunpack.c.l.b16 %v885
    %v920 = vld [vmem:[#allocation7] sm:$0xff]
    %v921 = vld [vmem:[#allocation7 + $0x8] sm:$0xff]
    %v922 = vld [vmem:[#allocation7 + $0x10] sm:$0xff]
    %v923 = vld [vmem:[#allocation7 + $0x18] sm:$0xff]
    %v924 = vld [vmem:[#allocation7 + $0x20] sm:$0xff]
    %v925 = vld [vmem:[#allocation7 + $0x28] sm:$0xff]
    %v926 = vld [vmem:[#allocation7 + $0x30] sm:$0xff]
    %v927 = vld [vmem:[#allocation7 + $0x38] sm:$0xff]
    %v928 = vld [vmem:[#allocation7 + $0x40] sm:$0xff]
    %v929 = vld [vmem:[#allocation7 + $0x48] sm:$0xff]
    %v930 = vld [vmem:[#allocation7 + $0x50] sm:$0xff]
    %v931 = vld [vmem:[#allocation7 + $0x58] sm:$0xff]
    %v932 = vld [vmem:[#allocation7 + $0x60] sm:$0xff]
    %v933 = vld [vmem:[#allocation7 + $0x68] sm:$0xff]
    %v934 = vld [vmem:[#allocation7 + $0x70] sm:$0xff]
    %v935 = vld [vmem:[#allocation7 + $0x78] sm:$0xff]
    %v936 = vld [vmem:[#allocation7 + $0x80] sm:$0xff]
    %v937 = vld [vmem:[#allocation7 + $0x88] sm:$0xff]
    %v938 = vld [vmem:[#allocation7 + $0x90] sm:$0xff]
    %v939 = vld [vmem:[#allocation7 + $0x98] sm:$0xff]
    %v940 = vld [vmem:[#allocation7 + $0xa0] sm:$0xff]
    %v941 = vld [vmem:[#allocation7 + $0xa8] sm:$0xff]
    %v942 = vld [vmem:[#allocation7 + $0xb0] sm:$0xff]
    %v943 = vld [vmem:[#allocation7 + $0xb8] sm:$0xff]
    %v944 = vld [vmem:[#allocation7 + $0xc0] sm:$0xff]
    %v945 = vld [vmem:[#allocation7 + $0xc8] sm:$0xff]
    %v946 = vld [vmem:[#allocation7 + $0xd0] sm:$0xff]
    %v947 = vld [vmem:[#allocation7 + $0xd8] sm:$0xff]
    %v948 = vld [vmem:[#allocation7 + $0xe0] sm:$0xff]
    %v949 = vld [vmem:[#allocation7 + $0xe8] sm:$0xff]
    %v950 = vld [vmem:[#allocation7 + $0xf0] sm:$0xff]
    %v951 = vld [vmem:[#allocation7 + $0xf8] sm:$0xff]
    %v952 = vld [vmem:[#allocation7 + $0x100] sm:$0xff]
    %v953 = vld [vmem:[#allocation7 + $0x108] sm:$0xff]
    %v954 = vld [vmem:[#allocation7 + $0x110] sm:$0xff]
    %v955 = vld [vmem:[#allocation7 + $0x118] sm:$0xff]
    %v956 = vld [vmem:[#allocation7 + $0x120] sm:$0xff]
    %v957 = vld [vmem:[#allocation7 + $0x128] sm:$0xff]
    %v958 = vld [vmem:[#allocation7 + $0x130] sm:$0xff]
    %v959 = vld [vmem:[#allocation7 + $0x138] sm:$0xff]
    %v960 = vld [vmem:[#allocation7 + $0x140] sm:$0xff]
    %v961 = vld [vmem:[#allocation7 + $0x148] sm:$0xff]
    %v962 = vld [vmem:[#allocation7 + $0x150] sm:$0xff]
    %v963 = vld [vmem:[#allocation7 + $0x158] sm:$0xff]
    %v964 = vld [vmem:[#allocation7 + $0x160] sm:$0xff]
    %v965 = vld [vmem:[#allocation7 + $0x168] sm:$0xff]
    %v966 = vld [vmem:[#allocation7 + $0x170] sm:$0xff]
    %v967 = vld [vmem:[#allocation7 + $0x178] sm:$0xff]
    %v968 = vld [vmem:[#allocation7 + $0x180] sm:$0xff]
    %v969 = vld [vmem:[#allocation7 + $0x188] sm:$0xff]
    %v970 = vld [vmem:[#allocation7 + $0x190] sm:$0xff]
    %v971 = vld [vmem:[#allocation7 + $0x198] sm:$0xff]
    %v972 = vld [vmem:[#allocation7 + $0x1a0] sm:$0xff]
    %v973 = vld [vmem:[#allocation7 + $0x1a8] sm:$0xff]
    %v974 = vld [vmem:[#allocation7 + $0x1b0] sm:$0xff]
    %v975 = vld [vmem:[#allocation7 + $0x1b8] sm:$0xff]
    %v976 = vld [vmem:[#allocation7 + $0x1c0] sm:$0xff]
    %v977 = vld [vmem:[#allocation7 + $0x1c8] sm:$0xff]
    %v978 = vld [vmem:[#allocation7 + $0x1d0] sm:$0xff]
    %v979 = vld [vmem:[#allocation7 + $0x1d8] sm:$0xff]
    %v980 = vld [vmem:[#allocation7 + $0x1e0] sm:$0xff]
    %v981 = vld [vmem:[#allocation7 + $0x1e8] sm:$0xff]
    %v982 = vld [vmem:[#allocation7 + $0x1f0] sm:$0xff]
    %v983 = vld [vmem:[#allocation7 + $0x1f8] sm:$0xff]
    %v984 = vld [vmem:[#allocation7 + $0x200] sm:$0xff]
    %v985 = vld [vmem:[#allocation7 + $0x208] sm:$0xff]
    %v986 = vld [vmem:[#allocation7 + $0x210] sm:$0xff]
    %v987 = vld [vmem:[#allocation7 + $0x218] sm:$0xff]
    %v988 = vld [vmem:[#allocation7 + $0x220] sm:$0xff]
    %v989 = vld [vmem:[#allocation7 + $0x228] sm:$0xff]
    %v990 = vld [vmem:[#allocation7 + $0x230] sm:$0xff]
    %v991 = vld [vmem:[#allocation7 + $0x238] sm:$0xff]
    %v992 = vld [vmem:[#allocation7 + $0x240] sm:$0xff]
    %v993 = vld [vmem:[#allocation7 + $0x248] sm:$0xff]
    %v994 = vld [vmem:[#allocation7 + $0x250] sm:$0xff]
    %v995 = vld [vmem:[#allocation7 + $0x258] sm:$0xff]
    %v996 = vld [vmem:[#allocation7 + $0x260] sm:$0xff]
    %v997 = vld [vmem:[#allocation7 + $0x268] sm:$0xff]
    %v998 = vld [vmem:[#allocation7 + $0x270] sm:$0xff]
    %v999 = vld [vmem:[#allocation7 + $0x278] sm:$0xff]
    %v1000 = vld [vmem:[#allocation7 + $0x280] sm:$0xff]
    %v1001 = vld [vmem:[#allocation7 + $0x288] sm:$0xff]
    %v1002 = vld [vmem:[#allocation7 + $0x290] sm:$0xff]
    %v1003 = vld [vmem:[#allocation7 + $0x298] sm:$0xff]
    %v1004 = vld [vmem:[#allocation7 + $0x2a0] sm:$0xff]
    %v1005 = vld [vmem:[#allocation7 + $0x2a8] sm:$0xff]
    %v1006 = vld [vmem:[#allocation7 + $0x2b0] sm:$0xff]
    %v1007 = vld [vmem:[#allocation7 + $0x2b8] sm:$0xff]
    %v1008 = vld [vmem:[#allocation7 + $0x2c0] sm:$0xff]
    %v1009 = vld [vmem:[#allocation7 + $0x2c8] sm:$0xff]
    %v1010 = vld [vmem:[#allocation7 + $0x2d0] sm:$0xff]
    %v1011 = vld [vmem:[#allocation7 + $0x2d8] sm:$0xff]
    %v1012 = vld [vmem:[#allocation7 + $0x2e0] sm:$0xff]
    %v1013 = vld [vmem:[#allocation7 + $0x2e8] sm:$0xff]
    %v1014 = vld [vmem:[#allocation7 + $0x2f0] sm:$0xff]
    %v1015 = vld [vmem:[#allocation7 + $0x2f8] sm:$0xff]
    %v1016 = vld [vmem:[#allocation7 + $0x300] sm:$0xff]
    %v1017 = vld [vmem:[#allocation7 + $0x308] sm:$0xff]
    %v1018 = vld [vmem:[#allocation7 + $0x310] sm:$0xff]
    %v1019 = vld [vmem:[#allocation7 + $0x318] sm:$0xff]
    %v1020 = vld [vmem:[#allocation7 + $0x320] sm:$0xff]
    %v1021 = vld [vmem:[#allocation7 + $0x328] sm:$0xff]
    %v1022 = vld [vmem:[#allocation7 + $0x330] sm:$0xff]
    %v1023 = vld [vmem:[#allocation7 + $0x338] sm:$0xff]
    %v1024 = vld [vmem:[#allocation7 + $0x340] sm:$0xff]
    %v1025 = vld [vmem:[#allocation7 + $0x348] sm:$0xff]
    %v1026 = vld [vmem:[#allocation7 + $0x350] sm:$0xff]
    %v1027 = vld [vmem:[#allocation7 + $0x358] sm:$0xff]
    %v1028 = vld [vmem:[#allocation7 + $0x360] sm:$0xff]
    %v1029 = vld [vmem:[#allocation7 + $0x368] sm:$0xff]
    %v1030 = vld [vmem:[#allocation7 + $0x370] sm:$0xff]
    %v1031 = vld [vmem:[#allocation7 + $0x378] sm:$0xff]
    %v1032 = vld [vmem:[#allocation7 + $0x380] sm:$0xff]
    %v1033 = vld [vmem:[#allocation7 + $0x388] sm:$0xff]
    %v1034 = vld [vmem:[#allocation7 + $0x390] sm:$0xff]
    %v1035 = vld [vmem:[#allocation7 + $0x398] sm:$0xff]
    %v1036 = vld [vmem:[#allocation7 + $0x3a0] sm:$0xff]
    %v1037 = vld [vmem:[#allocation7 + $0x3a8] sm:$0xff]
    %v1038 = vld [vmem:[#allocation7 + $0x3b0] sm:$0xff]
    %v1039 = vld [vmem:[#allocation7 + $0x3b8] sm:$0xff]
    %v1040 = vld [vmem:[#allocation7 + $0x3c0] sm:$0xff]
    %v1041 = vld [vmem:[#allocation7 + $0x3c8] sm:$0xff]
    %v1042 = vld [vmem:[#allocation7 + $0x3d0] sm:$0xff]
    %v1043 = vld [vmem:[#allocation7 + $0x3d8] sm:$0xff]
    %v1044 = vld [vmem:[#allocation7 + $0x3e0] sm:$0xff]
    %v1045 = vld [vmem:[#allocation7 + $0x3e8] sm:$0xff]
    %v1046 = vld [vmem:[#allocation7 + $0x3f0] sm:$0xff]
    %v1047 = vld [vmem:[#allocation7 + $0x3f8] sm:$0xff]
    %v1048 = vld [vmem:[#allocation7 + $0x400] sm:$0xff]
    %v1049 = vld [vmem:[#allocation7 + $0x408] sm:$0xff]
    %v1050 = vld [vmem:[#allocation7 + $0x410] sm:$0xff]
    %v1051 = vld [vmem:[#allocation7 + $0x418] sm:$0xff]
    %v1052 = vld [vmem:[#allocation7 + $0x420] sm:$0xff]
    %v1053 = vld [vmem:[#allocation7 + $0x428] sm:$0xff]
    %v1054 = vld [vmem:[#allocation7 + $0x430] sm:$0xff]
    %v1055 = vld [vmem:[#allocation7 + $0x438] sm:$0xff]
    %v1056 = vld [vmem:[#allocation7 + $0x440] sm:$0xff]
    %v1057 = vld [vmem:[#allocation7 + $0x448] sm:$0xff]
    %v1058 = vld [vmem:[#allocation7 + $0x450] sm:$0xff]
    %v1059 = vld [vmem:[#allocation7 + $0x458] sm:$0xff]
    %v1060 = vld [vmem:[#allocation7 + $0x460] sm:$0xff]
    %v1061 = vld [vmem:[#allocation7 + $0x468] sm:$0xff]
    %v1062 = vld [vmem:[#allocation7 + $0x470] sm:$0xff]
    %v1063 = vld [vmem:[#allocation7 + $0x478] sm:$0xff]
    %v1064 = vld [vmem:[#allocation7 + $0x480] sm:$0xff]
    %v1065 = vld [vmem:[#allocation7 + $0x488] sm:$0xff]
    %v1066 = vld [vmem:[#allocation7 + $0x490] sm:$0xff]
    %v1067 = vld [vmem:[#allocation7 + $0x498] sm:$0xff]
    %v1068 = vld [vmem:[#allocation7 + $0x4a0] sm:$0xff]
    %v1069 = vld [vmem:[#allocation7 + $0x4a8] sm:$0xff]
    %v1070 = vld [vmem:[#allocation7 + $0x4b0] sm:$0xff]
    %v1071 = vld [vmem:[#allocation7 + $0x4b8] sm:$0xff]
    %v1072 = vld [vmem:[#allocation7 + $0x4c0] sm:$0xff]
    %v1073 = vld [vmem:[#allocation7 + $0x4c8] sm:$0xff]
    %v1074 = vld [vmem:[#allocation7 + $0x4d0] sm:$0xff]
    %v1075 = vld [vmem:[#allocation7 + $0x4d8] sm:$0xff]
    %v1076 = vld [vmem:[#allocation7 + $0x4e0] sm:$0xff]
    %v1077 = vld [vmem:[#allocation7 + $0x4e8] sm:$0xff]
    %v1078 = vld [vmem:[#allocation7 + $0x4f0] sm:$0xff]
    %v1079 = vld [vmem:[#allocation7 + $0x4f8] sm:$0xff]
    %v1080 = vpack.c.b16 %v903, %v903
    %v1081 = vpack.c.b16 %v904, %v903
    %v1082 = vpack.c.b16 %v905, %v903
    %v1083 = vpack.c.b16 %v906, %v904
    %v1084 = vpack.c.b16 %v907, %v905
    %v1085 = vpack.c.b16 %v908, %v906
    %v1086 = vpack.c.b16 %v909, %v907
    %v1087 = vpack.c.b16 %v910, %v908
    %v1088 = vpack.c.b16 %v911, %v909
    %v1089 = vpack.c.b16 %v912, %v910
    %v1090 = vpack.c.b16 %v913, %v911
    %v1091 = vpack.c.b16 %v914, %v912
    %v1092 = vpack.c.b16 %v915, %v913
    %v1093 = vpack.c.b16 %v916, %v914
    %v1094 = vpack.c.b16 %v917, %v915
    %v1095 = vpack.c.b16 %v918, %v916
    %v1096 = vpack.c.b16 %v919, %v917
    %v1097 = vpack.c.b16 %v903, %v918
    %v1098 = vpack.c.b16 %v903, %v919
    %v1278 = vunpack.c.l.b16 %v920
    %v1279 = vunpack.c.h.b16 %v920
    %v1280 = vunpack.c.l.b16 %v921
    %v1281 = vunpack.c.h.b16 %v921
    %v1282 = vunpack.c.l.b16 %v922
    %v1283 = vunpack.c.h.b16 %v922
    %v1284 = vunpack.c.l.b16 %v923
    %v1285 = vunpack.c.h.b16 %v923
    %v1286 = vunpack.c.l.b16 %v924
    %v1287 = vunpack.c.h.b16 %v924
    %v1288 = vunpack.c.l.b16 %v925
    %v1289 = vunpack.c.h.b16 %v925
    %v1290 = vunpack.c.l.b16 %v926
    %v1291 = vunpack.c.h.b16 %v926
    %v1292 = vunpack.c.l.b16 %v927
    %v1293 = vunpack.c.h.b16 %v927
    %v1294 = vunpack.c.l.b16 %v928
    %v1295 = vunpack.c.h.b16 %v928
    %v1296 = vunpack.c.l.b16 %v929
    %v1297 = vunpack.c.h.b16 %v929
    %v1298 = vunpack.c.l.b16 %v930
    %v1299 = vunpack.c.h.b16 %v930
    %v1300 = vunpack.c.l.b16 %v931
    %v1301 = vunpack.c.h.b16 %v931
    %v1302 = vunpack.c.l.b16 %v932
    %v1303 = vunpack.c.h.b16 %v932
    %v1304 = vunpack.c.l.b16 %v933
    %v1305 = vunpack.c.h.b16 %v933
    %v1306 = vunpack.c.l.b16 %v934
    %v1307 = vunpack.c.h.b16 %v934
    %v1308 = vunpack.c.l.b16 %v935
    %v1309 = vunpack.c.h.b16 %v935
    %v1310 = vunpack.c.l.b16 %v936
    %v1311 = vunpack.c.h.b16 %v936
    %v1312 = vunpack.c.l.b16 %v937
    %v1313 = vunpack.c.h.b16 %v937
    %v1314 = vunpack.c.l.b16 %v938
    %v1315 = vunpack.c.h.b16 %v938
    %v1316 = vunpack.c.l.b16 %v939
    %v1317 = vunpack.c.h.b16 %v939
    %v1318 = vunpack.c.l.b16 %v940
    %v1319 = vunpack.c.h.b16 %v940
    %v1320 = vunpack.c.l.b16 %v941
    %v1321 = vunpack.c.h.b16 %v941
    %v1322 = vunpack.c.l.b16 %v942
    %v1323 = vunpack.c.h.b16 %v942
    %v1324 = vunpack.c.l.b16 %v943
    %v1325 = vunpack.c.h.b16 %v943
    %v1326 = vunpack.c.l.b16 %v944
    %v1327 = vunpack.c.h.b16 %v944
    %v1328 = vunpack.c.l.b16 %v945
    %v1329 = vunpack.c.h.b16 %v945
    %v1330 = vunpack.c.l.b16 %v946
    %v1331 = vunpack.c.h.b16 %v946
    %v1332 = vunpack.c.l.b16 %v947
    %v1333 = vunpack.c.h.b16 %v947
    %v1334 = vunpack.c.l.b16 %v948
    %v1335 = vunpack.c.h.b16 %v948
    %v1336 = vunpack.c.l.b16 %v949
    %v1337 = vunpack.c.h.b16 %v949
    %v1338 = vunpack.c.l.b16 %v950
    %v1339 = vunpack.c.h.b16 %v950
    %v1340 = vunpack.c.l.b16 %v951
    %v1341 = vunpack.c.h.b16 %v951
    %v1342 = vunpack.c.l.b16 %v952
    %v1343 = vunpack.c.h.b16 %v952
    %v1344 = vunpack.c.l.b16 %v953
    %v1345 = vunpack.c.h.b16 %v953
    %v1346 = vunpack.c.l.b16 %v954
    %v1347 = vunpack.c.h.b16 %v954
    %v1348 = vunpack.c.l.b16 %v955
    %v1349 = vunpack.c.h.b16 %v955
    %v1350 = vunpack.c.l.b16 %v956
    %v1351 = vunpack.c.h.b16 %v956
    %v1352 = vunpack.c.l.b16 %v957
    %v1353 = vunpack.c.h.b16 %v957
    %v1354 = vunpack.c.l.b16 %v958
    %v1355 = vunpack.c.h.b16 %v958
    %v1356 = vunpack.c.l.b16 %v959
    %v1357 = vunpack.c.h.b16 %v959
    %v1358 = vunpack.c.l.b16 %v960
    %v1359 = vunpack.c.h.b16 %v960
    %v1360 = vunpack.c.l.b16 %v961
    %v1361 = vunpack.c.h.b16 %v961
    %v1362 = vunpack.c.l.b16 %v962
    %v1363 = vunpack.c.h.b16 %v962
    %v1364 = vunpack.c.l.b16 %v963
    %v1365 = vunpack.c.h.b16 %v963
    %v1366 = vunpack.c.l.b16 %v964
    %v1367 = vunpack.c.h.b16 %v964
    %v1368 = vunpack.c.l.b16 %v965
    %v1369 = vunpack.c.h.b16 %v965
    %v1370 = vunpack.c.l.b16 %v966
    %v1371 = vunpack.c.h.b16 %v966
    %v1372 = vunpack.c.l.b16 %v967
    %v1373 = vunpack.c.h.b16 %v967
    %v1374 = vunpack.c.l.b16 %v968
    %v1375 = vunpack.c.h.b16 %v968
    %v1376 = vunpack.c.l.b16 %v969
    %v1377 = vunpack.c.h.b16 %v969
    %v1378 = vunpack.c.l.b16 %v970
    %v1379 = vunpack.c.h.b16 %v970
    %v1380 = vunpack.c.l.b16 %v971
    %v1381 = vunpack.c.h.b16 %v971
    %v1382 = vunpack.c.l.b16 %v972
    %v1383 = vunpack.c.h.b16 %v972
    %v1384 = vunpack.c.l.b16 %v973
    %v1385 = vunpack.c.h.b16 %v973
    %v1386 = vunpack.c.l.b16 %v974
    %v1387 = vunpack.c.h.b16 %v974
    %v1388 = vunpack.c.l.b16 %v975
    %v1389 = vunpack.c.h.b16 %v975
    %v1390 = vunpack.c.l.b16 %v976
    %v1391 = vunpack.c.h.b16 %v976
    %v1392 = vunpack.c.l.b16 %v977
    %v1393 = vunpack.c.h.b16 %v977
    %v1394 = vunpack.c.l.b16 %v978
    %v1395 = vunpack.c.h.b16 %v978
    %v1396 = vunpack.c.l.b16 %v979
    %v1397 = vunpack.c.h.b16 %v979
    %v1398 = vunpack.c.l.b16 %v980
    %v1399 = vunpack.c.h.b16 %v980
    %v1400 = vunpack.c.l.b16 %v981
    %v1401 = vunpack.c.h.b16 %v981
    %v1402 = vunpack.c.l.b16 %v982
    %v1403 = vunpack.c.h.b16 %v982
    %v1404 = vunpack.c.l.b16 %v983
    %v1405 = vunpack.c.h.b16 %v983
    %v1406 = vunpack.c.l.b16 %v984
    %v1407 = vunpack.c.h.b16 %v984
    %v1408 = vunpack.c.l.b16 %v985
    %v1409 = vunpack.c.h.b16 %v985
    %v1410 = vunpack.c.l.b16 %v986
    %v1411 = vunpack.c.h.b16 %v986
    %v1412 = vunpack.c.l.b16 %v987
    %v1413 = vunpack.c.h.b16 %v987
    %v1414 = vunpack.c.l.b16 %v988
    %v1415 = vunpack.c.h.b16 %v988
    %v1416 = vunpack.c.l.b16 %v989
    %v1417 = vunpack.c.h.b16 %v989
    %v1418 = vunpack.c.l.b16 %v990
    %v1419 = vunpack.c.h.b16 %v990
    %v1420 = vunpack.c.l.b16 %v991
    %v1421 = vunpack.c.h.b16 %v991
    %v1422 = vunpack.c.l.b16 %v992
    %v1423 = vunpack.c.h.b16 %v992
    %v1424 = vunpack.c.l.b16 %v993
    %v1425 = vunpack.c.h.b16 %v993
    %v1426 = vunpack.c.l.b16 %v994
    %v1427 = vunpack.c.h.b16 %v994
    %v1428 = vunpack.c.l.b16 %v995
    %v1429 = vunpack.c.h.b16 %v995
    %v1430 = vunpack.c.l.b16 %v996
    %v1431 = vunpack.c.h.b16 %v996
    %v1432 = vunpack.c.l.b16 %v997
    %v1433 = vunpack.c.h.b16 %v997
    %v1434 = vunpack.c.l.b16 %v998
    %v1435 = vunpack.c.h.b16 %v998
    %v1436 = vunpack.c.l.b16 %v999
    %v1437 = vunpack.c.h.b16 %v999
    %v1438 = vunpack.c.l.b16 %v1000
    %v1439 = vunpack.c.h.b16 %v1000
    %v1440 = vunpack.c.l.b16 %v1001
    %v1441 = vunpack.c.h.b16 %v1001
    %v1442 = vunpack.c.l.b16 %v1002
    %v1443 = vunpack.c.h.b16 %v1002
    %v1444 = vunpack.c.l.b16 %v1003
    %v1445 = vunpack.c.h.b16 %v1003
    %v1446 = vunpack.c.l.b16 %v1004
    %v1447 = vunpack.c.h.b16 %v1004
    %v1448 = vunpack.c.l.b16 %v1005
    %v1449 = vunpack.c.h.b16 %v1005
    %v1450 = vunpack.c.l.b16 %v1006
    %v1451 = vunpack.c.h.b16 %v1006
    %v1452 = vunpack.c.l.b16 %v1007
    %v1453 = vunpack.c.h.b16 %v1007
    %v1454 = vunpack.c.l.b16 %v1008
    %v1455 = vunpack.c.h.b16 %v1008
    %v1456 = vunpack.c.l.b16 %v1009
    %v1457 = vunpack.c.h.b16 %v1009
    %v1458 = vunpack.c.l.b16 %v1010
    %v1459 = vunpack.c.h.b16 %v1010
    %v1460 = vunpack.c.l.b16 %v1011
    %v1461 = vunpack.c.h.b16 %v1011
    %v1462 = vunpack.c.l.b16 %v1012
    %v1463 = vunpack.c.h.b16 %v1012
    %v1464 = vunpack.c.l.b16 %v1013
    %v1465 = vunpack.c.h.b16 %v1013
    %v1466 = vunpack.c.l.b16 %v1014
    %v1467 = vunpack.c.h.b16 %v1014
    %v1468 = vunpack.c.l.b16 %v1015
    %v1469 = vunpack.c.h.b16 %v1015
    %v1470 = vunpack.c.l.b16 %v1016
    %v1471 = vunpack.c.h.b16 %v1016
    %v1472 = vunpack.c.l.b16 %v1017
    %v1473 = vunpack.c.h.b16 %v1017
    %v1474 = vunpack.c.l.b16 %v1018
    %v1475 = vunpack.c.h.b16 %v1018
    %v1476 = vunpack.c.l.b16 %v1019
    %v1477 = vunpack.c.h.b16 %v1019
    %v1478 = vunpack.c.l.b16 %v1020
    %v1479 = vunpack.c.h.b16 %v1020
    %v1480 = vunpack.c.l.b16 %v1021
    %v1481 = vunpack.c.h.b16 %v1021
    %v1482 = vunpack.c.l.b16 %v1022
    %v1483 = vunpack.c.h.b16 %v1022
    %v1484 = vunpack.c.l.b16 %v1023
    %v1485 = vunpack.c.h.b16 %v1023
    %v1486 = vunpack.c.l.b16 %v1024
    %v1487 = vunpack.c.h.b16 %v1024
    %v1488 = vunpack.c.l.b16 %v1025
    %v1489 = vunpack.c.h.b16 %v1025
    %v1490 = vunpack.c.l.b16 %v1026
    %v1491 = vunpack.c.h.b16 %v1026
    %v1492 = vunpack.c.l.b16 %v1027
    %v1493 = vunpack.c.h.b16 %v1027
    %v1494 = vunpack.c.l.b16 %v1028
    %v1495 = vunpack.c.h.b16 %v1028
    %v1496 = vunpack.c.l.b16 %v1029
    %v1497 = vunpack.c.h.b16 %v1029
    %v1498 = vunpack.c.l.b16 %v1030
    %v1499 = vunpack.c.h.b16 %v1030
    %v1500 = vunpack.c.l.b16 %v1031
    %v1501 = vunpack.c.h.b16 %v1031
    %v1502 = vunpack.c.l.b16 %v1032
    %v1503 = vunpack.c.h.b16 %v1032
    %v1504 = vunpack.c.l.b16 %v1033
    %v1505 = vunpack.c.h.b16 %v1033
    %v1506 = vunpack.c.l.b16 %v1034
    %v1507 = vunpack.c.h.b16 %v1034
    %v1508 = vunpack.c.l.b16 %v1035
    %v1509 = vunpack.c.h.b16 %v1035
    %v1510 = vunpack.c.l.b16 %v1036
    %v1511 = vunpack.c.h.b16 %v1036
    %v1512 = vunpack.c.l.b16 %v1037
    %v1513 = vunpack.c.h.b16 %v1037
    %v1514 = vunpack.c.l.b16 %v1038
    %v1515 = vunpack.c.h.b16 %v1038
    %v1516 = vunpack.c.l.b16 %v1039
    %v1517 = vunpack.c.h.b16 %v1039
    %v1518 = vunpack.c.l.b16 %v1040
    %v1519 = vunpack.c.h.b16 %v1040
    %v1520 = vunpack.c.l.b16 %v1041
    %v1521 = vunpack.c.h.b16 %v1041
    %v1522 = vunpack.c.l.b16 %v1042
    %v1523 = vunpack.c.h.b16 %v1042
    %v1524 = vunpack.c.l.b16 %v1043
    %v1525 = vunpack.c.h.b16 %v1043
    %v1526 = vunpack.c.l.b16 %v1044
    %v1527 = vunpack.c.h.b16 %v1044
    %v1528 = vunpack.c.l.b16 %v1045
    %v1529 = vunpack.c.h.b16 %v1045
    %v1530 = vunpack.c.l.b16 %v1046
    %v1531 = vunpack.c.h.b16 %v1046
    %v1532 = vunpack.c.l.b16 %v1047
    %v1533 = vunpack.c.h.b16 %v1047
    %v1534 = vunpack.c.l.b16 %v1048
    %v1535 = vunpack.c.h.b16 %v1048
    %v1536 = vunpack.c.l.b16 %v1049
    %v1537 = vunpack.c.h.b16 %v1049
    %v1538 = vunpack.c.l.b16 %v1050
    %v1539 = vunpack.c.h.b16 %v1050
    %v1540 = vunpack.c.l.b16 %v1051
    %v1541 = vunpack.c.h.b16 %v1051
    %v1542 = vunpack.c.l.b16 %v1052
    %v1543 = vunpack.c.h.b16 %v1052
    %v1544 = vunpack.c.l.b16 %v1053
    %v1545 = vunpack.c.h.b16 %v1053
    %v1546 = vunpack.c.l.b16 %v1054
    %v1547 = vunpack.c.h.b16 %v1054
    %v1548 = vunpack.c.l.b16 %v1055
    %v1549 = vunpack.c.h.b16 %v1055
    %v1550 = vunpack.c.l.b16 %v1056
    %v1551 = vunpack.c.h.b16 %v1056
    %v1552 = vunpack.c.l.b16 %v1057
    %v1553 = vunpack.c.h.b16 %v1057
    %v1554 = vunpack.c.l.b16 %v1058
    %v1555 = vunpack.c.h.b16 %v1058
    %v1556 = vunpack.c.l.b16 %v1059
    %v1557 = vunpack.c.h.b16 %v1059
    %v1558 = vunpack.c.l.b16 %v1060
    %v1559 = vunpack.c.h.b16 %v1060
    %v1560 = vunpack.c.l.b16 %v1061
    %v1561 = vunpack.c.h.b16 %v1061
    %v1562 = vunpack.c.l.b16 %v1062
    %v1563 = vunpack.c.h.b16 %v1062
    %v1564 = vunpack.c.l.b16 %v1063
    %v1565 = vunpack.c.h.b16 %v1063
    %v1566 = vunpack.c.l.b16 %v1064
    %v1567 = vunpack.c.h.b16 %v1064
    %v1568 = vunpack.c.l.b16 %v1065
    %v1569 = vunpack.c.h.b16 %v1065
    %v1570 = vunpack.c.l.b16 %v1066
    %v1571 = vunpack.c.h.b16 %v1066
    %v1572 = vunpack.c.l.b16 %v1067
    %v1573 = vunpack.c.h.b16 %v1067
    %v1574 = vunpack.c.l.b16 %v1068
    %v1575 = vunpack.c.h.b16 %v1068
    %v1576 = vunpack.c.l.b16 %v1069
    %v1577 = vunpack.c.h.b16 %v1069
    %v1578 = vunpack.c.l.b16 %v1070
    %v1579 = vunpack.c.h.b16 %v1070
    %v1580 = vunpack.c.l.b16 %v1071
    %v1581 = vunpack.c.h.b16 %v1071
    %v1582 = vunpack.c.l.b16 %v1072
    %v1583 = vunpack.c.h.b16 %v1072
    %v1584 = vunpack.c.l.b16 %v1073
    %v1585 = vunpack.c.h.b16 %v1073
    %v1586 = vunpack.c.l.b16 %v1074
    %v1587 = vunpack.c.h.b16 %v1074
    %v1588 = vunpack.c.l.b16 %v1075
    %v1589 = vunpack.c.h.b16 %v1075
    %v1590 = vunpack.c.l.b16 %v1076
    %v1591 = vunpack.c.h.b16 %v1076
    %v1592 = vunpack.c.l.b16 %v1077
    %v1593 = vunpack.c.h.b16 %v1077
    %v1594 = vunpack.c.l.b16 %v1078
    %v1595 = vunpack.c.h.b16 %v1078
    %v1596 = vunpack.c.l.b16 %v1079
    %v1597 = vunpack.c.h.b16 %v1079
    %v1598 = vpack.c.b16 %v1280, %v1278
    %v1599 = vpack.c.b16 %v1281, %v1279
    %v1600 = vpack.c.b16 %v1284, %v1282
    %v1601 = vpack.c.b16 %v1285, %v1283
    %v1602 = vpack.c.b16 %v1288, %v1286
    %v1603 = vpack.c.b16 %v1289, %v1287
    %v1604 = vpack.c.b16 %v1292, %v1290
    %v1605 = vpack.c.b16 %v1293, %v1291
    %v1606 = vpack.c.b16 %v1296, %v1294
    %v1607 = vpack.c.b16 %v1297, %v1295
    %v1608 = vpack.c.b16 %v1300, %v1298
    %v1609 = vpack.c.b16 %v1301, %v1299
    %v1610 = vpack.c.b16 %v1304, %v1302
    %v1611 = vpack.c.b16 %v1305, %v1303
    %v1612 = vpack.c.b16 %v1308, %v1306
    %v1613 = vpack.c.b16 %v1309, %v1307
    %v1614 = vpack.c.b16 %v1312, %v1310
    %v1615 = vpack.c.b16 %v1313, %v1311
    %v1616 = vpack.c.b16 %v1316, %v1314
    %v1617 = vpack.c.b16 %v1317, %v1315
    %v1618 = vpack.c.b16 %v1320, %v1318
    %v1619 = vpack.c.b16 %v1321, %v1319
    %v1620 = vpack.c.b16 %v1324, %v1322
    %v1621 = vpack.c.b16 %v1325, %v1323
    %v1622 = vpack.c.b16 %v1328, %v1326
    %v1623 = vpack.c.b16 %v1329, %v1327
    %v1624 = vpack.c.b16 %v1332, %v1330
    %v1625 = vpack.c.b16 %v1333, %v1331
    %v1626 = vpack.c.b16 %v1336, %v1334
    %v1627 = vpack.c.b16 %v1337, %v1335
    %v1628 = vpack.c.b16 %v1340, %v1338
    %v1629 = vpack.c.b16 %v1341, %v1339
    %v1630 = vpack.c.b16 %v1344, %v1342
    %v1631 = vpack.c.b16 %v1345, %v1343
    %v1632 = vpack.c.b16 %v1348, %v1346
    %v1633 = vpack.c.b16 %v1349, %v1347
    %v1634 = vpack.c.b16 %v1352, %v1350
    %v1635 = vpack.c.b16 %v1353, %v1351
    %v1636 = vpack.c.b16 %v1356, %v1354
    %v1637 = vpack.c.b16 %v1357, %v1355
    %v1638 = vpack.c.b16 %v1360, %v1358
    %v1639 = vpack.c.b16 %v1361, %v1359
    %v1640 = vpack.c.b16 %v1364, %v1362
    %v1641 = vpack.c.b16 %v1365, %v1363
    %v1642 = vpack.c.b16 %v1368, %v1366
    %v1643 = vpack.c.b16 %v1369, %v1367
    %v1644 = vpack.c.b16 %v1372, %v1370
    %v1645 = vpack.c.b16 %v1373, %v1371
    %v1646 = vpack.c.b16 %v1376, %v1374
    %v1647 = vpack.c.b16 %v1377, %v1375
    %v1648 = vpack.c.b16 %v1380, %v1378
    %v1649 = vpack.c.b16 %v1381, %v1379
    %v1650 = vpack.c.b16 %v1384, %v1382
    %v1651 = vpack.c.b16 %v1385, %v1383
    %v1652 = vpack.c.b16 %v1388, %v1386
    %v1653 = vpack.c.b16 %v1389, %v1387
    %v1654 = vpack.c.b16 %v1392, %v1390
    %v1655 = vpack.c.b16 %v1393, %v1391
    %v1656 = vpack.c.b16 %v1396, %v1394
    %v1657 = vpack.c.b16 %v1397, %v1395
    %v1658 = vpack.c.b16 %v1400, %v1398
    %v1659 = vpack.c.b16 %v1401, %v1399
    %v1660 = vpack.c.b16 %v1404, %v1402
    %v1661 = vpack.c.b16 %v1405, %v1403
    %v1662 = vpack.c.b16 %v1408, %v1406
    %v1663 = vpack.c.b16 %v1409, %v1407
    %v1664 = vpack.c.b16 %v1412, %v1410
    %v1665 = vpack.c.b16 %v1413, %v1411
    %v1666 = vpack.c.b16 %v1416, %v1414
    %v1667 = vpack.c.b16 %v1417, %v1415
    %v1668 = vpack.c.b16 %v1420, %v1418
    %v1669 = vpack.c.b16 %v1421, %v1419
    %v1670 = vpack.c.b16 %v1424, %v1422
    %v1671 = vpack.c.b16 %v1425, %v1423
    %v1672 = vpack.c.b16 %v1428, %v1426
    %v1673 = vpack.c.b16 %v1429, %v1427
    %v1674 = vpack.c.b16 %v1432, %v1430
    %v1675 = vpack.c.b16 %v1433, %v1431
    %v1676 = vpack.c.b16 %v1436, %v1434
    %v1677 = vpack.c.b16 %v1437, %v1435
    %v1678 = vpack.c.b16 %v1440, %v1438
    %v1679 = vpack.c.b16 %v1441, %v1439
    %v1680 = vpack.c.b16 %v1444, %v1442
    %v1681 = vpack.c.b16 %v1445, %v1443
    %v1682 = vpack.c.b16 %v1448, %v1446
    %v1683 = vpack.c.b16 %v1449, %v1447
    %v1684 = vpack.c.b16 %v1452, %v1450
    %v1685 = vpack.c.b16 %v1453, %v1451
    %v1686 = vpack.c.b16 %v1456, %v1454
    %v1687 = vpack.c.b16 %v1457, %v1455
    %v1688 = vpack.c.b16 %v1460, %v1458
    %v1689 = vpack.c.b16 %v1461, %v1459
    %v1690 = vpack.c.b16 %v1464, %v1462
    %v1691 = vpack.c.b16 %v1465, %v1463
    %v1692 = vpack.c.b16 %v1468, %v1466
    %v1693 = vpack.c.b16 %v1469, %v1467
    %v1694 = vpack.c.b16 %v1472, %v1470
    %v1695 = vpack.c.b16 %v1473, %v1471
    %v1696 = vpack.c.b16 %v1476, %v1474
    %v1697 = vpack.c.b16 %v1477, %v1475
    %v1698 = vpack.c.b16 %v1480, %v1478
    %v1699 = vpack.c.b16 %v1481, %v1479
    %v1700 = vpack.c.b16 %v1484, %v1482
    %v1701 = vpack.c.b16 %v1485, %v1483
    %v1702 = vpack.c.b16 %v1488, %v1486
    %v1703 = vpack.c.b16 %v1489, %v1487
    %v1704 = vpack.c.b16 %v1492, %v1490
    %v1705 = vpack.c.b16 %v1493, %v1491
    %v1706 = vpack.c.b16 %v1496, %v1494
    %v1707 = vpack.c.b16 %v1497, %v1495
    %v1708 = vpack.c.b16 %v1500, %v1498
    %v1709 = vpack.c.b16 %v1501, %v1499
    %v1710 = vpack.c.b16 %v1504, %v1502
    %v1711 = vpack.c.b16 %v1505, %v1503
    %v1712 = vpack.c.b16 %v1508, %v1506
    %v1713 = vpack.c.b16 %v1509, %v1507
    %v1714 = vpack.c.b16 %v1512, %v1510
    %v1715 = vpack.c.b16 %v1513, %v1511
    %v1716 = vpack.c.b16 %v1516, %v1514
    %v1717 = vpack.c.b16 %v1517, %v1515
    %v1718 = vpack.c.b16 %v1520, %v1518
    %v1719 = vpack.c.b16 %v1521, %v1519
    %v1720 = vpack.c.b16 %v1524, %v1522
    %v1721 = vpack.c.b16 %v1525, %v1523
    %v1722 = vpack.c.b16 %v1528, %v1526
    %v1723 = vpack.c.b16 %v1529, %v1527
    %v1724 = vpack.c.b16 %v1532, %v1530
    %v1725 = vpack.c.b16 %v1533, %v1531
    %v1726 = vpack.c.b16 %v1536, %v1534
    %v1727 = vpack.c.b16 %v1537, %v1535
    %v1728 = vpack.c.b16 %v1540, %v1538
    %v1729 = vpack.c.b16 %v1541, %v1539
    %v1730 = vpack.c.b16 %v1544, %v1542
    %v1731 = vpack.c.b16 %v1545, %v1543
    %v1732 = vpack.c.b16 %v1548, %v1546
    %v1733 = vpack.c.b16 %v1549, %v1547
    %v1734 = vpack.c.b16 %v1552, %v1550
    %v1735 = vpack.c.b16 %v1553, %v1551
    %v1736 = vpack.c.b16 %v1556, %v1554
    %v1737 = vpack.c.b16 %v1557, %v1555
    %v1738 = vpack.c.b16 %v1560, %v1558
    %v1739 = vpack.c.b16 %v1561, %v1559
    %v1740 = vpack.c.b16 %v1564, %v1562
    %v1741 = vpack.c.b16 %v1565, %v1563
    %v1742 = vpack.c.b16 %v1568, %v1566
    %v1743 = vpack.c.b16 %v1569, %v1567
    %v1744 = vpack.c.b16 %v1572, %v1570
    %v1745 = vpack.c.b16 %v1573, %v1571
    %v1746 = vpack.c.b16 %v1576, %v1574
    %v1747 = vpack.c.b16 %v1577, %v1575
    %v1748 = vpack.c.b16 %v1580, %v1578
    %v1749 = vpack.c.b16 %v1581, %v1579
    %v1750 = vpack.c.b16 %v1584, %v1582
    %v1751 = vpack.c.b16 %v1585, %v1583
    %v1752 = vpack.c.b16 %v1588, %v1586
    %v1753 = vpack.c.b16 %v1589, %v1587
    %v1754 = vpack.c.b16 %v1592, %v1590
    %v1755 = vpack.c.b16 %v1593, %v1591
    %v1756 = vpack.c.b16 %v1596, %v1594
    %v1757 = vpack.c.b16 %v1597, %v1595
    %1918 = vmatprep.subr.bf16.mxu0 %v1599
    %1919 = vmatpush1.bf16.msra.mxu0 %v1598
    %1920 = vmatprep.subr.bf16.mxu0 %v1601
    %1921 = vmatpush1.bf16.msra.mxu0 %v1600
    %1922 = vmatprep.subr.bf16.mxu0 %v1603
    %1923 = vmatpush1.bf16.msra.mxu0 %v1602
    %1924 = vmatprep.subr.bf16.mxu0 %v1605
    %1925 = vmatpush1.bf16.msra.mxu0 %v1604
    %1926 = vmatprep.subr.bf16.mxu0 %v1607
    %1927 = vmatpush1.bf16.msra.mxu0 %v1606
    %1928 = vmatprep.subr.bf16.mxu0 %v1609
    %1929 = vmatpush1.bf16.msra.mxu0 %v1608
    %1930 = vmatprep.subr.bf16.mxu0 %v1611
    %1931 = vmatpush1.bf16.msra.mxu0 %v1610
    %1932 = vmatprep.subr.bf16.mxu0 %v1613
    %1933 = vmatpush1.bf16.msra.mxu0 %v1612
    %1934 = vmatprep.subr.bf16.mxu0 %v1615
    %1935 = vmatpush1.bf16.msra.mxu0 %v1614
    %1936 = vmatprep.subr.bf16.mxu0 %v1617
    %1937 = vmatpush1.bf16.msra.mxu0 %v1616
    %1938 = vmatprep.subr.bf16.mxu0 %v1619
    %1939 = vmatpush1.bf16.msra.mxu0 %v1618
    %1940 = vmatprep.subr.bf16.mxu0 %v1621
    %1941 = vmatpush1.bf16.msra.mxu0 %v1620
    %1942 = vmatprep.subr.bf16.mxu0 %v1623
    %1943 = vmatpush1.bf16.msra.mxu0 %v1622
    %1944 = vmatprep.subr.bf16.mxu0 %v1625
    %1945 = vmatpush1.bf16.msra.mxu0 %v1624
    %1946 = vmatprep.subr.bf16.mxu0 %v1627
    %1947 = vmatpush1.bf16.msra.mxu0 %v1626
    %1948 = vmatprep.subr.bf16.mxu0 %v1629
    %1949 = vmatpush1.bf16.msra.mxu0 %v1628
    %1950 = vmatprep.mubr.bf16.mxu0 %v1080
    %1951 = vmatmul.mubr.bf16.gmra.mrb[0].mxu0 %v1080
    %v1952 = vpop.f32.mrb[0].mxu0
    %v1953 = vadd.f32 0.0, %v1952
    %v1954 = vpop.f32.mrb[0].mxu0
    %v1955 = vadd.f32 0.0, %v1954
    %v1956 = vpop.f32.mrb[0].mxu0
    %v1957 = vadd.f32 0.0, %v1956
    %v1958 = vpop.f32.mrb[0].mxu0
    %v1959 = vadd.f32 0.0, %v1958
    %1960 = vmatprep.mubr.bf16.mxu0 %v1084
    %1961 = vmatmul.mubr.bf16.gmra.mrb[0].mxu0 %v1083
    %v1962 = vpop.f32.mrb[0].mxu0
    %v1963 = vadd.f32 0.0, %v1962
    %v1964 = vpop.f32.mrb[0].mxu0
    %v1965 = vadd.f32 0.0, %v1964
    %v1966 = vpop.f32.mrb[0].mxu0
    %v1967 = vadd.f32 0.0, %v1966
    %v1968 = vpop.f32.mrb[0].mxu0
    %v1969 = vadd.f32 0.0, %v1968
    %1970 = vmatprep.mubr.bf16.mxu0 %v1088
    %1971 = vmatmul.mubr.bf16.gmra.mrb[0].mxu0 %v1087
    %v1972 = vpop.f32.mrb[0].mxu0
    %v1973 = vadd.f32 0.0, %v1972
    %v1974 = vpop.f32.mrb[0].mxu0
    %v1975 = vadd.f32 0.0, %v1974
    %v1976 = vpop.f32.mrb[0].mxu0
    %v1977 = vadd.f32 0.0, %v1976
    %v1978 = vpop.f32.mrb[0].mxu0
    %v1979 = vadd.f32 0.0, %v1978
    %1980 = vmatprep.mubr.bf16.mxu0 %v1092
    %1981 = vmatmul.mubr.bf16.gmra.mrb[0].mxu0 %v1091
    %v1982 = vpop.f32.mrb[0].mxu0
    %v1983 = vadd.f32 0.0, %v1982
    %v1984 = vpop.f32.mrb[0].mxu0
    %v1985 = vadd.f32 0.0, %v1984
    %v1986 = vpop.f32.mrb[0].mxu0
    %v1987 = vadd.f32 0.0, %v1986
    %v1988 = vpop.f32.mrb[0].mxu0
    %v1989 = vadd.f32 0.0, %v1988
    %1990 = vdwg.mxu0
    %1991 = vmatprep.subr.bf16.mxu0 %v1631
    %1992 = vmatpush1.bf16.msra.mxu0 %v1630
    %1993 = vmatprep.subr.bf16.mxu0 %v1633
    %1994 = vmatpush1.bf16.msra.mxu0 %v1632
    %1995 = vmatprep.subr.bf16.mxu0 %v1635
    %1996 = vmatpush1.bf16.msra.mxu0 %v1634
    %1997 = vmatprep.subr.bf16.mxu0 %v1637
    %1998 = vmatpush1.bf16.msra.mxu0 %v1636
    %1999 = vmatprep.subr.bf16.mxu0 %v1639
    %2000 = vmatpush1.bf16.msra.mxu0 %v1638
    %2001 = vmatprep.subr.bf16.mxu0 %v1641
    %2002 = vmatpush1.bf16.msra.mxu0 %v1640
    %2003 = vmatprep.subr.bf16.mxu0 %v1643
    %2004 = vmatpush1.bf16.msra.mxu0 %v1642
    %2005 = vmatprep.subr.bf16.mxu0 %v1645
    %2006 = vmatpush1.bf16.msra.mxu0 %v1644
    %2007 = vmatprep.subr.bf16.mxu0 %v1647
    %2008 = vmatpush1.bf16.msra.mxu0 %v1646
    %2009 = vmatprep.subr.bf16.mxu0 %v1649
    %2010 = vmatpush1.bf16.msra.mxu0 %v1648
    %2011 = vmatprep.subr.bf16.mxu0 %v1651
    %2012 = vmatpush1.bf16.msra.mxu0 %v1650
    %2013 = vmatprep.subr.bf16.mxu0 %v1653
    %2014 = vmatpush1.bf16.msra.mxu0 %v1652
    %2015 = vmatprep.subr.bf16.mxu0 %v1655
    %2016 = vmatpush1.bf16.msra.mxu0 %v1654
    %2017 = vmatprep.subr.bf16.mxu0 %v1657
    %2018 = vmatpush1.bf16.msra.mxu0 %v1656
    %2019 = vmatprep.subr.bf16.mxu0 %v1659
    %2020 = vmatpush1.bf16.msra.mxu0 %v1658
    %2021 = vmatprep.subr.bf16.mxu0 %v1661
    %2022 = vmatpush1.bf16.msra.mxu0 %v1660
    %2023 = vmatprep.mubr.bf16.mxu0 %v1082
    %2024 = vmatmul.mubr.bf16.gmra.mrb[0].mxu0 %v1081
    %v2025 = vpop.f32.mrb[0].mxu0
    %v2026 = vadd.f32 %v1953, %v2025
    %v2027 = vpop.f32.mrb[0].mxu0
    %v2028 = vadd.f32 %v1955, %v2027
    %v2029 = vpop.f32.mrb[0].mxu0
    %v2030 = vadd.f32 %v1957, %v2029
    %v2031 = vpop.f32.mrb[0].mxu0
    %v2032 = vadd.f32 %v1959, %v2031
    %2033 = vmatprep.mubr.bf16.mxu0 %v1086
    %2034 = vmatmul.mubr.bf16.gmra.mrb[0].mxu0 %v1085
    %v2035 = vpop.f32.mrb[0].mxu0
    %v2036 = vadd.f32 %v1963, %v2035
    %v2037 = vpop.f32.mrb[0].mxu0
    %v2038 = vadd.f32 %v1965, %v2037
    %v2039 = vpop.f32.mrb[0].mxu0
    %v2040 = vadd.f32 %v1967, %v2039
    %v2041 = vpop.f32.mrb[0].mxu0
    %v2042 = vadd.f32 %v1969, %v2041
    %2043 = vmatprep.mubr.bf16.mxu0 %v1090
    %2044 = vmatmul.mubr.bf16.gmra.mrb[0].mxu0 %v1089
    %v2045 = vpop.f32.mrb[0].mxu0
    %v2046 = vadd.f32 %v1973, %v2045
    %v2047 = vpop.f32.mrb[0].mxu0
    %v2048 = vadd.f32 %v1975, %v2047
    %v2049 = vpop.f32.mrb[0].mxu0
    %v2050 = vadd.f32 %v1977, %v2049
    %v2051 = vpop.f32.mrb[0].mxu0
    %v2052 = vadd.f32 %v1979, %v2051
    %2053 = vmatprep.mubr.bf16.mxu0 %v1094
    %2054 = vmatmul.mubr.bf16.gmra.mrb[0].mxu0 %v1093
    %v2055 = vpop.f32.mrb[0].mxu0
    %v2056 = vadd.f32 %v1983, %v2055
    %v2057 = vpop.f32.mrb[0].mxu0
    %v2058 = vadd.f32 %v1985, %v2057
    %v2059 = vpop.f32.mrb[0].mxu0
    %v2060 = vadd.f32 %v1987, %v2059
    %v2061 = vpop.f32.mrb[0].mxu0
    %v2062 = vadd.f32 %v1989, %v2061
    %2063 = vdwg.mxu0
    %2064 = vmatprep.subr.bf16.mxu0 %v1663
    %2065 = vmatpush1.bf16.msra.mxu0 %v1662
    %2066 = vmatprep.subr.bf16.mxu0 %v1665
    %2067 = vmatpush1.bf16.msra.mxu0 %v1664
    %2068 = vmatprep.subr.bf16.mxu0 %v1667
    %2069 = vmatpush1.bf16.msra.mxu0 %v1666
    %2070 = vmatprep.subr.bf16.mxu0 %v1669
    %2071 = vmatpush1.bf16.msra.mxu0 %v1668
    %2072 = vmatprep.subr.bf16.mxu0 %v1671
    %2073 = vmatpush1.bf16.msra.mxu0 %v1670
    %2074 = vmatprep.subr.bf16.mxu0 %v1673
    %2075 = vmatpush1.bf16.msra.mxu0 %v1672
    %2076 = vmatprep.subr.bf16.mxu0 %v1675
    %2077 = vmatpush1.bf16.msra.mxu0 %v1674
    %2078 = vmatprep.subr.bf16.mxu0 %v1677
    %2079 = vmatpush1.bf16.msra.mxu0 %v1676
    %2080 = vmatprep.subr.bf16.mxu0 %v1679
    %2081 = vmatpush1.bf16.msra.mxu0 %v1678
    %2082 = vmatprep.subr.bf16.mxu0 %v1681
    %2083 = vmatpush1.bf16.msra.mxu0 %v1680
    %2084 = vmatprep.subr.bf16.mxu0 %v1683
    %2085 = vmatpush1.bf16.msra.mxu0 %v1682
    %2086 = vmatprep.subr.bf16.mxu0 %v1685
    %2087 = vmatpush1.bf16.msra.mxu0 %v1684
    %2088 = vmatprep.subr.bf16.mxu0 %v1687
    %2089 = vmatpush1.bf16.msra.mxu0 %v1686
    %2090 = vmatprep.subr.bf16.mxu0 %v1689
    %2091 = vmatpush1.bf16.msra.mxu0 %v1688
    %2092 = vmatprep.subr.bf16.mxu0 %v1691
    %2093 = vmatpush1.bf16.msra.mxu0 %v1690
    %2094 = vmatprep.subr.bf16.mxu0 %v1693
    %2095 = vmatpush1.bf16.msra.mxu0 %v1692
    %2096 = vmatprep.mubr.bf16.mxu0 %v1084
    %2097 = vmatmul.mubr.bf16.gmra.mrb[0].mxu0 %v1083
    %v2098 = vpop.f32.mrb[0].mxu0
    %v2099 = vadd.f32 %v2026, %v2098
    %v2100 = vpop.f32.mrb[0].mxu0
    %v2101 = vadd.f32 %v2028, %v2100
    %v2102 = vpop.f32.mrb[0].mxu0
    %v2103 = vadd.f32 %v2030, %v2102
    %v2104 = vpop.f32.mrb[0].mxu0
    %v2105 = vadd.f32 %v2032, %v2104
    %2106 = vmatprep.mubr.bf16.mxu0 %v1088
    %2107 = vmatmul.mubr.bf16.gmra.mrb[0].mxu0 %v1087
    %v2108 = vpop.f32.mrb[0].mxu0
    %v2109 = vadd.f32 %v2036, %v2108
    %v2110 = vpop.f32.mrb[0].mxu0
    %v2111 = vadd.f32 %v2038, %v2110
    %v2112 = vpop.f32.mrb[0].mxu0
    %v2113 = vadd.f32 %v2040, %v2112
    %v2114 = vpop.f32.mrb[0].mxu0
    %v2115 = vadd.f32 %v2042, %v2114
    %2116 = vmatprep.mubr.bf16.mxu0 %v1092
    %2117 = vmatmul.mubr.bf16.gmra.mrb[0].mxu0 %v1091
    %v2118 = vpop.f32.mrb[0].mxu0
    %v2119 = vadd.f32 %v2046, %v2118
    %v2120 = vpop.f32.mrb[0].mxu0
    %v2121 = vadd.f32 %v2048, %v2120
    %v2122 = vpop.f32.mrb[0].mxu0
    %v2123 = vadd.f32 %v2050, %v2122
    %v2124 = vpop.f32.mrb[0].mxu0
    %v2125 = vadd.f32 %v2052, %v2124
    %2126 = vmatprep.mubr.bf16.mxu0 %v1096
    %2127 = vmatmul.mubr.bf16.gmra.mrb[0].mxu0 %v1095
    %v2128 = vpop.f32.mrb[0].mxu0
    %v2129 = vadd.f32 %v2056, %v2128
    %v2130 = vpop.f32.mrb[0].mxu0
    %v2131 = vadd.f32 %v2058, %v2130
    %v2132 = vpop.f32.mrb[0].mxu0
    %v2133 = vadd.f32 %v2060, %v2132
    %v2134 = vpop.f32.mrb[0].mxu0
    %v2135 = vadd.f32 %v2062, %v2134
    %2136 = vdwg.mxu0
    %2137 = vmatprep.subr.bf16.mxu0 %v1695
    %2138 = vmatpush1.bf16.msra.mxu0 %v1694
    %2139 = vmatprep.subr.bf16.mxu0 %v1697
    %2140 = vmatpush1.bf16.msra.mxu0 %v1696
    %2141 = vmatprep.subr.bf16.mxu0 %v1699
    %2142 = vmatpush1.bf16.msra.mxu0 %v1698
    %2143 = vmatprep.subr.bf16.mxu0 %v1701
    %2144 = vmatpush1.bf16.msra.mxu0 %v1700
    %2145 = vmatprep.subr.bf16.mxu0 %v1703
    %2146 = vmatpush1.bf16.msra.mxu0 %v1702
    %2147 = vmatprep.subr.bf16.mxu0 %v1705
    %2148 = vmatpush1.bf16.msra.mxu0 %v1704
    %2149 = vmatprep.subr.bf16.mxu0 %v1707
    %2150 = vmatpush1.bf16.msra.mxu0 %v1706
    %2151 = vmatprep.subr.bf16.mxu0 %v1709
    %2152 = vmatpush1.bf16.msra.mxu0 %v1708
    %2153 = vmatprep.subr.bf16.mxu0 %v1711
    %2154 = vmatpush1.bf16.msra.mxu0 %v1710
    %2155 = vmatprep.subr.bf16.mxu0 %v1713
    %2156 = vmatpush1.bf16.msra.mxu0 %v1712
    %2157 = vmatprep.subr.bf16.mxu0 %v1715
    %2158 = vmatpush1.bf16.msra.mxu0 %v1714
    %2159 = vmatprep.subr.bf16.mxu0 %v1717
    %2160 = vmatpush1.bf16.msra.mxu0 %v1716
    %2161 = vmatprep.subr.bf16.mxu0 %v1719
    %2162 = vmatpush1.bf16.msra.mxu0 %v1718
    %2163 = vmatprep.subr.bf16.mxu0 %v1721
    %2164 = vmatpush1.bf16.msra.mxu0 %v1720
    %2165 = vmatprep.subr.bf16.mxu0 %v1723
    %2166 = vmatpush1.bf16.msra.mxu0 %v1722
    %2167 = vmatprep.subr.bf16.mxu0 %v1725
    %2168 = vmatpush1.bf16.msra.mxu0 %v1724
    %2169 = vmatprep.mubr.bf16.mxu0 %v1086
    %2170 = vmatmul.mubr.bf16.gmra.mrb[0].mxu0 %v1085
    %v2171 = vpop.f32.mrb[0].mxu0
    %v2172 = vadd.f32 %v2099, %v2171
    %v2173 = vpop.f32.mrb[0].mxu0
    %v2174 = vadd.f32 %v2101, %v2173
    %v2175 = vpop.f32.mrb[0].mxu0
    %v2176 = vadd.f32 %v2103, %v2175
    %v2177 = vpop.f32.mrb[0].mxu0
    %v2178 = vadd.f32 %v2105, %v2177
    %2179 = vmatprep.mubr.bf16.mxu0 %v1090
    %2180 = vmatmul.mubr.bf16.gmra.mrb[0].mxu0 %v1089
    %v2181 = vpop.f32.mrb[0].mxu0
    %v2182 = vadd.f32 %v2109, %v2181
    %v2183 = vpop.f32.mrb[0].mxu0
    %v2184 = vadd.f32 %v2111, %v2183
    %v2185 = vpop.f32.mrb[0].mxu0
    %v2186 = vadd.f32 %v2113, %v2185
    %v2187 = vpop.f32.mrb[0].mxu0
    %v2188 = vadd.f32 %v2115, %v2187
    %2189 = vmatprep.mubr.bf16.mxu0 %v1094
    %2190 = vmatmul.mubr.bf16.gmra.mrb[0].mxu0 %v1093
    %v2191 = vpop.f32.mrb[0].mxu0
    %v2192 = vadd.f32 %v2119, %v2191
    %v2193 = vpop.f32.mrb[0].mxu0
    %v2194 = vadd.f32 %v2121, %v2193
    %v2195 = vpop.f32.mrb[0].mxu0
    %v2196 = vadd.f32 %v2123, %v2195
    %v2197 = vpop.f32.mrb[0].mxu0
    %v2198 = vadd.f32 %v2125, %v2197
    %2199 = vmatprep.mubr.bf16.mxu0 %v1098
    %2200 = vmatmul.mubr.bf16.gmra.mrb[0].mxu0 %v1097
    %v2201 = vpop.f32.mrb[0].mxu0
    %v2202 = vadd.f32 %v2129, %v2201
    %v2203 = vpop.f32.mrb[0].mxu0
    %v2204 = vadd.f32 %v2131, %v2203
    %v2205 = vpop.f32.mrb[0].mxu0
    %v2206 = vadd.f32 %v2133, %v2205
    %v2207 = vpop.f32.mrb[0].mxu0
    %v2208 = vadd.f32 %v2135, %v2207
    %2209 = vdwg.mxu0
    %2210 = vmatprep.subr.bf16.mxu0 %v1727
    %2211 = vmatpush1.bf16.msra.mxu0 %v1726
    %2212 = vmatprep.subr.bf16.mxu0 %v1729
    %2213 = vmatpush1.bf16.msra.mxu0 %v1728
    %2214 = vmatprep.subr.bf16.mxu0 %v1731
    %2215 = vmatpush1.bf16.msra.mxu0 %v1730
    %2216 = vmatprep.subr.bf16.mxu0 %v1733
    %2217 = vmatpush1.bf16.msra.mxu0 %v1732
    %2218 = vmatprep.subr.bf16.mxu0 %v1735
    %2219 = vmatpush1.bf16.msra.mxu0 %v1734
    %2220 = vmatprep.subr.bf16.mxu0 %v1737
    %2221 = vmatpush1.bf16.msra.mxu0 %v1736
    %2222 = vmatprep.subr.bf16.mxu0 %v1739
    %2223 = vmatpush1.bf16.msra.mxu0 %v1738
    %2224 = vmatprep.subr.bf16.mxu0 %v1741
    %2225 = vmatpush1.bf16.msra.mxu0 %v1740
    %2226 = vmatprep.subr.bf16.mxu0 %v1743
    %2227 = vmatpush1.bf16.msra.mxu0 %v1742
    %2228 = vmatprep.subr.bf16.mxu0 %v1745
    %2229 = vmatpush1.bf16.msra.mxu0 %v1744
    %2230 = vmatprep.subr.bf16.mxu0 %v1747
    %2231 = vmatpush1.bf16.msra.mxu0 %v1746
    %2232 = vmatprep.subr.bf16.mxu0 %v1749
    %2233 = vmatpush1.bf16.msra.mxu0 %v1748
    %2234 = vmatprep.subr.bf16.mxu0 %v1751
    %2235 = vmatpush1.bf16.msra.mxu0 %v1750
    %2236 = vmatprep.subr.bf16.mxu0 %v1753
    %2237 = vmatpush1.bf16.msra.mxu0 %v1752
    %2238 = vmatprep.subr.bf16.mxu0 %v1755
    %2239 = vmatpush1.bf16.msra.mxu0 %v1754
    %2240 = vmatprep.subr.bf16.mxu0 %v1757
    %2241 = vmatpush1.bf16.msra.mxu0 %v1756
    %2242 = vmatprep.mubr.bf16.mxu0 %v1088
    %2243 = vmatmul.mubr.bf16.gmra.mrb[0].mxu0 %v1087
    %v2244 = vpop.f32.mrb[0].mxu0
    %v2245 = vadd.f32 %v2172, %v2244
    %v2246 = vpop.f32.mrb[0].mxu0
    %v2247 = vadd.f32 %v2174, %v2246
    %v2248 = vpop.f32.mrb[0].mxu0
    %v2249 = vadd.f32 %v2176, %v2248
    %v2250 = vpop.f32.mrb[0].mxu0
    %v2251 = vadd.f32 %v2178, %v2250
    %2252 = vmatprep.mubr.bf16.mxu0 %v1092
    %2253 = vmatmul.mubr.bf16.gmra.mrb[0].mxu0 %v1091
    %v2254 = vpop.f32.mrb[0].mxu0
    %v2255 = vadd.f32 %v2182, %v2254
    %v2256 = vpop.f32.mrb[0].mxu0
    %v2257 = vadd.f32 %v2184, %v2256
    %v2258 = vpop.f32.mrb[0].mxu0
    %v2259 = vadd.f32 %v2186, %v2258
    %v2260 = vpop.f32.mrb[0].mxu0
    %v2261 = vadd.f32 %v2188, %v2260
    %2262 = vmatprep.mubr.bf16.mxu0 %v1096
    %2263 = vmatmul.mubr.bf16.gmra.mrb[0].mxu0 %v1095
    %v2264 = vpop.f32.mrb[0].mxu0
    %v2265 = vadd.f32 %v2192, %v2264
    %v2266 = vpop.f32.mrb[0].mxu0
    %v2267 = vadd.f32 %v2194, %v2266
    %v2268 = vpop.f32.mrb[0].mxu0
    %v2269 = vadd.f32 %v2196, %v2268
    %v2270 = vpop.f32.mrb[0].mxu0
    %v2271 = vadd.f32 %v2198, %v2270
    %2272 = vmatprep.mubr.bf16.mxu0 %v1080
    %2273 = vmatmul.mubr.bf16.gmra.mrb[0].mxu0 %v1080
    %v2274 = vpop.f32.mrb[0].mxu0
    %v2275 = vadd.f32 %v2202, %v2274
    %v2276 = vpop.f32.mrb[0].mxu0
    %v2277 = vadd.f32 %v2204, %v2276
    %v2278 = vpop.f32.mrb[0].mxu0
    %v2279 = vadd.f32 %v2206, %v2278
    %v2280 = vpop.f32.mrb[0].mxu0
    %v2281 = vadd.f32 %v2208, %v2280
    %2282 = vdwg.mxu0
    %v2283 = vld [vmem:[%s4] sm:$0x3]
    %v2285 = vlaneseq
    %v2286 = vshrl.u32 %v2285, 7
    %v2287 = vsub.s32 0, %v2286
    %v2288 = vrot.slane %v2283, %v2287
    %v2289 = vlaneseq
    %v2290 = vshrl.u32 %v2289, 7
    %v2291 = vsub.s32 1, %v2290
    %v2292 = vrot.slane %v2283, %v2291
    %v2295 = vadd.f32 %v2245, %v2288
    %v2296 = vadd.f32 %v2247, %v2292
    %v2297 = vadd.f32 %v2249, %v2288
    %v2298 = vadd.f32 %v2251, %v2292
    %v2299 = vadd.f32 %v2255, %v2288
    %v2300 = vadd.f32 %v2257, %v2292
    %v2301 = vadd.f32 %v2259, %v2288
    %v2302 = vadd.f32 %v2261, %v2292
    %v2303 = vadd.f32 %v2265, %v2288
    %v2304 = vadd.f32 %v2267, %v2292
    %v2305 = vadd.f32 %v2269, %v2288
    %v2306 = vadd.f32 %v2271, %v2292
    %v2307 = vadd.f32 %v2275, %v2288
    %v2308 = vadd.f32 %v2277, %v2292
    %v2309 = vadd.f32 %v2279, %v2288
    %v2310 = vadd.f32 %v2281, %v2292
    %v2311 = vmax.f32 %v2295, 0.0
    %v2312 = vmax.f32 %v2296, 0.0
    %v2313 = vmax.f32 %v2297, 0.0
    %v2314 = vmax.f32 %v2298, 0.0
    %v2315 = vmax.f32 %v2299, 0.0
    %v2316 = vmax.f32 %v2300, 0.0
    %v2317 = vmax.f32 %v2301, 0.0
    %v2318 = vmax.f32 %v2302, 0.0
    %v2319 = vmax.f32 %v2303, 0.0
    %v2320 = vmax.f32 %v2304, 0.0
    %v2321 = vmax.f32 %v2305, 0.0
    %v2322 = vmax.f32 %v2306, 0.0
    %v2323 = vmax.f32 %v2307, 0.0
    %v2324 = vmax.f32 %v2308, 0.0
    %v2325 = vmax.f32 %v2309, 0.0
    %v2326 = vmax.f32 %v2310, 0.0
    %v2327 = vmax.f32 %v2311, %v2313
    %v2328 = vmax.f32 %v2312, %v2314
    %v2329 = vmax.f32 %v2315, %v2317
    %v2330 = vmax.f32 %v2316, %v2318
    %v2331 = vmax.f32 %v2319, %v2321
    %v2332 = vmax.f32 %v2320, %v2322
    %v2333 = vmax.f32 %v2323, %v2325
    %v2334 = vmax.f32 %v2324, %v2326
    %2343 = vrot.lane.b32.xlu0 %v2327, 96
    %v2344 = vpop.permute.xlu0 %2343
    %2345 = vrot.lane.b32.xlu0 %v2328, 96
    %v2346 = vpop.permute.xlu0 %2345
    %2347 = vrot.lane.b32.xlu0 %v2329, 96
    %v2348 = vpop.permute.xlu0 %2347
    %2349 = vrot.lane.b32.xlu0 %v2330, 96
    %v2350 = vpop.permute.xlu0 %2349
    %2351 = vrot.lane.b32.xlu0 %v2331, 96
    %v2352 = vpop.permute.xlu0 %2351
    %2353 = vrot.lane.b32.xlu0 %v2332, 96
    %v2354 = vpop.permute.xlu0 %2353
    %2355 = vrot.lane.b32.xlu0 %v2333, 96
    %v2356 = vpop.permute.xlu0 %2355
    %2357 = vrot.lane.b32.xlu0 %v2334, 96
    %v2358 = vpop.permute.xlu0 %2357
    %vm2359 = vcmask 785408
    %v2360 = vsel %vm2359, %v2344, %v2346
    %v2361 = vsel %vm2359, %v2348, %v2350
    %v2362 = vsel %vm2359, %v2352, %v2354
    %v2363 = vsel %vm2359, %v2356, %v2358
    %v2372 = vsel %vm2359, %v2346, 0.0
    %v2373 = vsel %vm2359, %v2350, 0.0
    %v2374 = vsel %vm2359, %v2354, 0.0
    %v2375 = vsel %vm2359, %v2358, 0.0
    %v2376 = vmax.f32 %v2327, %v2360
    %v2377 = vmax.f32 %v2328, %v2372
    %v2378 = vmax.f32 %v2329, %v2361
    %v2379 = vmax.f32 %v2330, %v2373
    %v2380 = vmax.f32 %v2331, %v2362
    %v2381 = vmax.f32 %v2332, %v2374
    %v2382 = vmax.f32 %v2333, %v2363
    %v2383 = vmax.f32 %v2334, %v2375
    %v2384 = vpack.c.bf16 %v2376, %v2376
    %v2385 = vpack.c.bf16 %v2377, %v2377
    %v2386 = vpack.c.bf16 %v2378, %v2378
    %v2387 = vpack.c.bf16 %v2379, %v2379
    %v2388 = vpack.c.bf16 %v2380, %v2380
    %v2389 = vpack.c.bf16 %v2381, %v2381
    %v2390 = vpack.c.bf16 %v2382, %v2382
    %v2391 = vpack.c.bf16 %v2383, %v2383
    %v2392 = vld [vmem:[#allocation8] sm:$0xf]
    %v2393 = vld [vmem:[#allocation8 + $0x4] sm:$0xf]
    %v2394 = vld [vmem:[#allocation8 + $0x8] sm:$0xf]
    %v2395 = vld [vmem:[#allocation8 + $0xc] sm:$0xf]
    %v2396 = vld [vmem:[#allocation8 + $0x10] sm:$0xf]
    %v2397 = vld [vmem:[#allocation8 + $0x14] sm:$0xf]
    %v2398 = vld [vmem:[#allocation8 + $0x18] sm:$0xf]
    %v2399 = vld [vmem:[#allocation8 + $0x1c] sm:$0xf]
    %v2400 = vld [vmem:[#allocation8 + $0x20] sm:$0xf]
    %v2401 = vld [vmem:[#allocation8 + $0x24] sm:$0xf]
    %v2402 = vld [vmem:[#allocation8 + $0x28] sm:$0xf]
    %v2403 = vld [vmem:[#allocation8 + $0x2c] sm:$0xf]
    %v2404 = vld [vmem:[#allocation8 + $0x30] sm:$0xf]
    %v2405 = vld [vmem:[#allocation8 + $0x34] sm:$0xf]
    %v2406 = vld [vmem:[#allocation8 + $0x38] sm:$0xf]
    %v2407 = vld [vmem:[#allocation8 + $0x3c] sm:$0xf]
    %v2408 = vld [vmem:[#allocation8 + $0x40] sm:$0xf]
    %v2409 = vld [vmem:[#allocation8 + $0x44] sm:$0xf]
    %v2410 = vld [vmem:[#allocation8 + $0x48] sm:$0xf]
    %v2411 = vld [vmem:[#allocation8 + $0x4c] sm:$0xf]
    %v2412 = vld [vmem:[#allocation8 + $0x50] sm:$0xf]
    %v2413 = vld [vmem:[#allocation8 + $0x54] sm:$0xf]
    %v2414 = vld [vmem:[#allocation8 + $0x58] sm:$0xf]
    %v2415 = vld [vmem:[#allocation8 + $0x5c] sm:$0xf]
    %v2416 = vld [vmem:[#allocation8 + $0x60] sm:$0xf]
    %v2417 = vld [vmem:[#allocation8 + $0x64] sm:$0xf]
    %v2418 = vld [vmem:[#allocation8 + $0x68] sm:$0xf]
    %v2419 = vld [vmem:[#allocation8 + $0x6c] sm:$0xf]
    %v2420 = vld [vmem:[#allocation8 + $0x70] sm:$0xf]
    %v2421 = vld [vmem:[#allocation8 + $0x74] sm:$0xf]
    %v2422 = vld [vmem:[#allocation8 + $0x78] sm:$0xf]
    %v2423 = vld [vmem:[#allocation8 + $0x7c] sm:$0xf]
    %v2424 = vld [vmem:[#allocation8 + $0x80] sm:$0xf]
    %v2425 = vld [vmem:[#allocation8 + $0x84] sm:$0xf]
    %v2426 = vld [vmem:[#allocation8 + $0x88] sm:$0xf]
    %v2427 = vld [vmem:[#allocation8 + $0x8c] sm:$0xf]
    %v2428 = vld [vmem:[#allocation8 + $0x90] sm:$0xf]
    %v2429 = vld [vmem:[#allocation8 + $0x94] sm:$0xf]
    %v2430 = vld [vmem:[#allocation8 + $0x98] sm:$0xf]
    %v2431 = vld [vmem:[#allocation8 + $0x9c] sm:$0xf]
    %v2432 = vld [vmem:[#allocation8 + $0xa0] sm:$0xf]
    %v2433 = vld [vmem:[#allocation8 + $0xa4] sm:$0xf]
    %v2434 = vld [vmem:[#allocation8 + $0xa8] sm:$0xf]
    %v2435 = vld [vmem:[#allocation8 + $0xac] sm:$0xf]
    %v2436 = vld [vmem:[#allocation8 + $0xb0] sm:$0xf]
    %v2437 = vld [vmem:[#allocation8 + $0xb4] sm:$0xf]
    %v2438 = vld [vmem:[#allocation8 + $0xb8] sm:$0xf]
    %v2439 = vld [vmem:[#allocation8 + $0xbc] sm:$0xf]
    %v2440 = vld [vmem:[#allocation8 + $0xc0] sm:$0xf]
    %v2441 = vld [vmem:[#allocation8 + $0xc4] sm:$0xf]
    %v2442 = vld [vmem:[#allocation8 + $0xc8] sm:$0xf]
    %v2443 = vld [vmem:[#allocation8 + $0xcc] sm:$0xf]
    %v2444 = vld [vmem:[#allocation8 + $0xd0] sm:$0xf]
    %v2445 = vld [vmem:[#allocation8 + $0xd4] sm:$0xf]
    %v2446 = vld [vmem:[#allocation8 + $0xd8] sm:$0xf]
    %v2447 = vld [vmem:[#allocation8 + $0xdc] sm:$0xf]
    %v2448 = vld [vmem:[#allocation8 + $0xe0] sm:$0xf]
    %v2449 = vld [vmem:[#allocation8 + $0xe4] sm:$0xf]
    %v2450 = vld [vmem:[#allocation8 + $0xe8] sm:$0xf]
    %v2451 = vld [vmem:[#allocation8 + $0xec] sm:$0xf]
    %v2452 = vld [vmem:[#allocation8 + $0xf0] sm:$0xf]
    %v2453 = vld [vmem:[#allocation8 + $0xf4] sm:$0xf]
    %v2454 = vld [vmem:[#allocation8 + $0xf8] sm:$0xf]
    %v2455 = vld [vmem:[#allocation8 + $0xfc] sm:$0xf]
    %v2456 = vld [vmem:[#allocation8 + $0x100] sm:$0xf]
    %v2457 = vld [vmem:[#allocation8 + $0x104] sm:$0xf]
    %v2458 = vld [vmem:[#allocation8 + $0x108] sm:$0xf]
    %v2459 = vld [vmem:[#allocation8 + $0x10c] sm:$0xf]
    %v2460 = vld [vmem:[#allocation8 + $0x110] sm:$0xf]
    %v2461 = vld [vmem:[#allocation8 + $0x114] sm:$0xf]
    %v2462 = vld [vmem:[#allocation8 + $0x118] sm:$0xf]
    %v2463 = vld [vmem:[#allocation8 + $0x11c] sm:$0xf]
    %v2464 = vld [vmem:[#allocation8 + $0x120] sm:$0xf]
    %v2465 = vld [vmem:[#allocation8 + $0x124] sm:$0xf]
    %v2466 = vld [vmem:[#allocation8 + $0x128] sm:$0xf]
    %v2467 = vld [vmem:[#allocation8 + $0x12c] sm:$0xf]
    %v2468 = vld [vmem:[#allocation8 + $0x130] sm:$0xf]
    %v2469 = vld [vmem:[#allocation8 + $0x134] sm:$0xf]
    %v2470 = vld [vmem:[#allocation8 + $0x138] sm:$0xf]
    %v2471 = vld [vmem:[#allocation8 + $0x13c] sm:$0xf]
    %v2472 = vld [vmem:[#allocation8 + $0x140] sm:$0xf]
    %v2473 = vld [vmem:[#allocation8 + $0x144] sm:$0xf]
    %v2474 = vld [vmem:[#allocation8 + $0x148] sm:$0xf]
    %v2475 = vld [vmem:[#allocation8 + $0x14c] sm:$0xf]
    %v2476 = vld [vmem:[#allocation8 + $0x150] sm:$0xf]
    %v2477 = vld [vmem:[#allocation8 + $0x154] sm:$0xf]
    %v2478 = vld [vmem:[#allocation8 + $0x158] sm:$0xf]
    %v2479 = vld [vmem:[#allocation8 + $0x15c] sm:$0xf]
    %v2480 = vld [vmem:[#allocation8 + $0x160] sm:$0xf]
    %v2481 = vld [vmem:[#allocation8 + $0x164] sm:$0xf]
    %v2482 = vld [vmem:[#allocation8 + $0x168] sm:$0xf]
    %v2483 = vld [vmem:[#allocation8 + $0x16c] sm:$0xf]
    %v2484 = vld [vmem:[#allocation8 + $0x170] sm:$0xf]
    %v2485 = vld [vmem:[#allocation8 + $0x174] sm:$0xf]
    %v2486 = vld [vmem:[#allocation8 + $0x178] sm:$0xf]
    %v2487 = vld [vmem:[#allocation8 + $0x17c] sm:$0xf]
    %v2488 = vld [vmem:[#allocation8 + $0x180] sm:$0xf]
    %v2489 = vld [vmem:[#allocation8 + $0x184] sm:$0xf]
    %v2490 = vld [vmem:[#allocation8 + $0x188] sm:$0xf]
    %v2491 = vld [vmem:[#allocation8 + $0x18c] sm:$0xf]
    %v2492 = vld [vmem:[#allocation8 + $0x190] sm:$0xf]
    %v2493 = vld [vmem:[#allocation8 + $0x194] sm:$0xf]
    %v2494 = vld [vmem:[#allocation8 + $0x198] sm:$0xf]
    %v2495 = vld [vmem:[#allocation8 + $0x19c] sm:$0xf]
    %v2496 = vld [vmem:[#allocation8 + $0x1a0] sm:$0xf]
    %v2497 = vld [vmem:[#allocation8 + $0x1a4] sm:$0xf]
    %v2498 = vld [vmem:[#allocation8 + $0x1a8] sm:$0xf]
    %v2499 = vld [vmem:[#allocation8 + $0x1ac] sm:$0xf]
    %v2500 = vld [vmem:[#allocation8 + $0x1b0] sm:$0xf]
    %v2501 = vld [vmem:[#allocation8 + $0x1b4] sm:$0xf]
    %v2502 = vld [vmem:[#allocation8 + $0x1b8] sm:$0xf]
    %v2503 = vld [vmem:[#allocation8 + $0x1bc] sm:$0xf]
    %v2504 = vld [vmem:[#allocation8 + $0x1c0] sm:$0xf]
    %v2505 = vld [vmem:[#allocation8 + $0x1c4] sm:$0xf]
    %v2506 = vld [vmem:[#allocation8 + $0x1c8] sm:$0xf]
    %v2507 = vld [vmem:[#allocation8 + $0x1cc] sm:$0xf]
    %v2508 = vld [vmem:[#allocation8 + $0x1d0] sm:$0xf]
    %v2509 = vld [vmem:[#allocation8 + $0x1d4] sm:$0xf]
    %v2510 = vld [vmem:[#allocation8 + $0x1d8] sm:$0xf]
    %v2511 = vld [vmem:[#allocation8 + $0x1dc] sm:$0xf]
    %v2512 = vld [vmem:[#allocation8 + $0x1e0] sm:$0xf]
    %v2513 = vld [vmem:[#allocation8 + $0x1e4] sm:$0xf]
    %v2514 = vld [vmem:[#allocation8 + $0x1e8] sm:$0xf]
    %v2515 = vld [vmem:[#allocation8 + $0x1ec] sm:$0xf]
    %v2516 = vld [vmem:[#allocation8 + $0x1f0] sm:$0xf]
    %v2517 = vld [vmem:[#allocation8 + $0x1f4] sm:$0xf]
    %v2518 = vld [vmem:[#allocation8 + $0x1f8] sm:$0xf]
    %v2519 = vld [vmem:[#allocation8 + $0x1fc] sm:$0xf]
    %v2520 = vld [vmem:[%s6] sm:$0x1]
    %v2522 = vlaneseq
    %v2523 = vshrl.u32 %v2522, 7
    %v2524 = vsub.s32 0, %v2523
    %v2525 = vrot.slane %v2520, %v2524
    %v2655 = vunpack.c.l.b16 %v2392
    %v2656 = vunpack.c.l.b16 %v2393
    %v2657 = vunpack.c.l.b16 %v2394
    %v2658 = vunpack.c.l.b16 %v2395
    %v2659 = vunpack.c.l.b16 %v2396
    %v2660 = vunpack.c.l.b16 %v2397
    %v2661 = vunpack.c.l.b16 %v2398
    %v2662 = vunpack.c.l.b16 %v2399
    %v2663 = vunpack.c.l.b16 %v2400
    %v2664 = vunpack.c.l.b16 %v2401
    %v2665 = vunpack.c.l.b16 %v2402
    %v2666 = vunpack.c.l.b16 %v2403
    %v2667 = vunpack.c.l.b16 %v2404
    %v2668 = vunpack.c.l.b16 %v2405
    %v2669 = vunpack.c.l.b16 %v2406
    %v2670 = vunpack.c.l.b16 %v2407
    %v2671 = vunpack.c.l.b16 %v2408
    %v2672 = vunpack.c.l.b16 %v2409
    %v2673 = vunpack.c.l.b16 %v2410
    %v2674 = vunpack.c.l.b16 %v2411
    %v2675 = vunpack.c.l.b16 %v2412
    %v2676 = vunpack.c.l.b16 %v2413
    %v2677 = vunpack.c.l.b16 %v2414
    %v2678 = vunpack.c.l.b16 %v2415
    %v2679 = vunpack.c.l.b16 %v2416
    %v2680 = vunpack.c.l.b16 %v2417
    %v2681 = vunpack.c.l.b16 %v2418
    %v2682 = vunpack.c.l.b16 %v2419
    %v2683 = vunpack.c.l.b16 %v2420
    %v2684 = vunpack.c.l.b16 %v2421
    %v2685 = vunpack.c.l.b16 %v2422
    %v2686 = vunpack.c.l.b16 %v2423
    %v2687 = vunpack.c.l.b16 %v2424
    %v2688 = vunpack.c.l.b16 %v2425
    %v2689 = vunpack.c.l.b16 %v2426
    %v2690 = vunpack.c.l.b16 %v2427
    %v2691 = vunpack.c.l.b16 %v2428
    %v2692 = vunpack.c.l.b16 %v2429
    %v2693 = vunpack.c.l.b16 %v2430
    %v2694 = vunpack.c.l.b16 %v2431
    %v2695 = vunpack.c.l.b16 %v2432
    %v2696 = vunpack.c.l.b16 %v2433
    %v2697 = vunpack.c.l.b16 %v2434
    %v2698 = vunpack.c.l.b16 %v2435
    %v2699 = vunpack.c.l.b16 %v2436
    %v2700 = vunpack.c.l.b16 %v2437
    %v2701 = vunpack.c.l.b16 %v2438
    %v2702 = vunpack.c.l.b16 %v2439
    %v2703 = vunpack.c.l.b16 %v2440
    %v2704 = vunpack.c.l.b16 %v2441
    %v2705 = vunpack.c.l.b16 %v2442
    %v2706 = vunpack.c.l.b16 %v2443
    %v2707 = vunpack.c.l.b16 %v2444
    %v2708 = vunpack.c.l.b16 %v2445
    %v2709 = vunpack.c.l.b16 %v2446
    %v2710 = vunpack.c.l.b16 %v2447
    %v2711 = vunpack.c.l.b16 %v2448
    %v2712 = vunpack.c.l.b16 %v2449
    %v2713 = vunpack.c.l.b16 %v2450
    %v2714 = vunpack.c.l.b16 %v2451
    %v2715 = vunpack.c.l.b16 %v2452
    %v2716 = vunpack.c.l.b16 %v2453
    %v2717 = vunpack.c.l.b16 %v2454
    %v2718 = vunpack.c.l.b16 %v2455
    %v2719 = vunpack.c.l.b16 %v2456
    %v2720 = vunpack.c.l.b16 %v2457
    %v2721 = vunpack.c.l.b16 %v2458
    %v2722 = vunpack.c.l.b16 %v2459
    %v2723 = vunpack.c.l.b16 %v2460
    %v2724 = vunpack.c.l.b16 %v2461
    %v2725 = vunpack.c.l.b16 %v2462
    %v2726 = vunpack.c.l.b16 %v2463
    %v2727 = vunpack.c.l.b16 %v2464
    %v2728 = vunpack.c.l.b16 %v2465
    %v2729 = vunpack.c.l.b16 %v2466
    %v2730 = vunpack.c.l.b16 %v2467
    %v2731 = vunpack.c.l.b16 %v2468
    %v2732 = vunpack.c.l.b16 %v2469
    %v2733 = vunpack.c.l.b16 %v2470
    %v2734 = vunpack.c.l.b16 %v2471
    %v2735 = vunpack.c.l.b16 %v2472
    %v2736 = vunpack.c.l.b16 %v2473
    %v2737 = vunpack.c.l.b16 %v2474
    %v2738 = vunpack.c.l.b16 %v2475
    %v2739 = vunpack.c.l.b16 %v2476
    %v2740 = vunpack.c.l.b16 %v2477
    %v2741 = vunpack.c.l.b16 %v2478
    %v2742 = vunpack.c.l.b16 %v2479
    %v2743 = vunpack.c.l.b16 %v2480
    %v2744 = vunpack.c.l.b16 %v2481
    %v2745 = vunpack.c.l.b16 %v2482
    %v2746 = vunpack.c.l.b16 %v2483
    %v2747 = vunpack.c.l.b16 %v2484
    %v2748 = vunpack.c.l.b16 %v2485
    %v2749 = vunpack.c.l.b16 %v2486
    %v2750 = vunpack.c.l.b16 %v2487
    %v2751 = vunpack.c.l.b16 %v2488
    %v2752 = vunpack.c.l.b16 %v2489
    %v2753 = vunpack.c.l.b16 %v2490
    %v2754 = vunpack.c.l.b16 %v2491
    %v2755 = vunpack.c.l.b16 %v2492
    %v2756 = vunpack.c.l.b16 %v2493
    %v2757 = vunpack.c.l.b16 %v2494
    %v2758 = vunpack.c.l.b16 %v2495
    %v2759 = vunpack.c.l.b16 %v2496
    %v2760 = vunpack.c.l.b16 %v2497
    %v2761 = vunpack.c.l.b16 %v2498
    %v2762 = vunpack.c.l.b16 %v2499
    %v2763 = vunpack.c.l.b16 %v2500
    %v2764 = vunpack.c.l.b16 %v2501
    %v2765 = vunpack.c.l.b16 %v2502
    %v2766 = vunpack.c.l.b16 %v2503
    %v2767 = vunpack.c.l.b16 %v2504
    %v2768 = vunpack.c.l.b16 %v2505
    %v2769 = vunpack.c.l.b16 %v2506
    %v2770 = vunpack.c.l.b16 %v2507
    %v2771 = vunpack.c.l.b16 %v2508
    %v2772 = vunpack.c.l.b16 %v2509
    %v2773 = vunpack.c.l.b16 %v2510
    %v2774 = vunpack.c.l.b16 %v2511
    %v2775 = vunpack.c.l.b16 %v2512
    %v2776 = vunpack.c.l.b16 %v2513
    %v2777 = vunpack.c.l.b16 %v2514
    %v2778 = vunpack.c.l.b16 %v2515
    %v2779 = vunpack.c.l.b16 %v2516
    %v2780 = vunpack.c.l.b16 %v2517
    %v2781 = vunpack.c.l.b16 %v2518
    %v2782 = vunpack.c.l.b16 %v2519
    %v2783 = vpack.c.b16 %v2656, %v2655
    %v2784 = vpack.c.b16 %v2658, %v2657
    %v2785 = vpack.c.b16 %v2660, %v2659
    %v2786 = vpack.c.b16 %v2662, %v2661
    %v2787 = vpack.c.b16 %v2664, %v2663
    %v2788 = vpack.c.b16 %v2666, %v2665
    %v2789 = vpack.c.b16 %v2668, %v2667
    %v2790 = vpack.c.b16 %v2670, %v2669
    %v2791 = vpack.c.b16 %v2672, %v2671
    %v2792 = vpack.c.b16 %v2674, %v2673
    %v2793 = vpack.c.b16 %v2676, %v2675
    %v2794 = vpack.c.b16 %v2678, %v2677
    %v2795 = vpack.c.b16 %v2680, %v2679
    %v2796 = vpack.c.b16 %v2682, %v2681
    %v2797 = vpack.c.b16 %v2684, %v2683
    %v2798 = vpack.c.b16 %v2686, %v2685
    %v2799 = vpack.c.b16 %v2688, %v2687
    %v2800 = vpack.c.b16 %v2690, %v2689
    %v2801 = vpack.c.b16 %v2692, %v2691
    %v2802 = vpack.c.b16 %v2694, %v2693
    %v2803 = vpack.c.b16 %v2696, %v2695
    %v2804 = vpack.c.b16 %v2698, %v2697
    %v2805 = vpack.c.b16 %v2700, %v2699
    %v2806 = vpack.c.b16 %v2702, %v2701
    %v2807 = vpack.c.b16 %v2704, %v2703
    %v2808 = vpack.c.b16 %v2706, %v2705
    %v2809 = vpack.c.b16 %v2708, %v2707
    %v2810 = vpack.c.b16 %v2710, %v2709
    %v2811 = vpack.c.b16 %v2712, %v2711
    %v2812 = vpack.c.b16 %v2714, %v2713
    %v2813 = vpack.c.b16 %v2716, %v2715
    %v2814 = vpack.c.b16 %v2718, %v2717
    %v2815 = vpack.c.b16 %v2720, %v2719
    %v2816 = vpack.c.b16 %v2722, %v2721
    %v2817 = vpack.c.b16 %v2724, %v2723
    %v2818 = vpack.c.b16 %v2726, %v2725
    %v2819 = vpack.c.b16 %v2728, %v2727
    %v2820 = vpack.c.b16 %v2730, %v2729
    %v2821 = vpack.c.b16 %v2732, %v2731
    %v2822 = vpack.c.b16 %v2734, %v2733
    %v2823 = vpack.c.b16 %v2736, %v2735
    %v2824 = vpack.c.b16 %v2738, %v2737
    %v2825 = vpack.c.b16 %v2740, %v2739
    %v2826 = vpack.c.b16 %v2742, %v2741
    %v2827 = vpack.c.b16 %v2744, %v2743
    %v2828 = vpack.c.b16 %v2746, %v2745
    %v2829 = vpack.c.b16 %v2748, %v2747
    %v2830 = vpack.c.b16 %v2750, %v2749
    %v2831 = vpack.c.b16 %v2752, %v2751
    %v2832 = vpack.c.b16 %v2754, %v2753
    %v2833 = vpack.c.b16 %v2756, %v2755
    %v2834 = vpack.c.b16 %v2758, %v2757
    %v2835 = vpack.c.b16 %v2760, %v2759
    %v2836 = vpack.c.b16 %v2762, %v2761
    %v2837 = vpack.c.b16 %v2764, %v2763
    %v2838 = vpack.c.b16 %v2766, %v2765
    %v2839 = vpack.c.b16 %v2768, %v2767
    %v2840 = vpack.c.b16 %v2770, %v2769
    %v2841 = vpack.c.b16 %v2772, %v2771
    %v2842 = vpack.c.b16 %v2774, %v2773
    %v2843 = vpack.c.b16 %v2776, %v2775
    %v2844 = vpack.c.b16 %v2778, %v2777
    %v2845 = vpack.c.b16 %v2780, %v2779
    %v2846 = vpack.c.b16 %v2782, %v2781
    %2911 = vmatprep.subr.bf16.mxu0 0
    %2912 = vmatpush1.bf16.msra.mxu0 %v2783
    %2913 = vmatprep.subr.bf16.mxu0 0
    %2914 = vmatpush1.bf16.msra.mxu0 %v2784
    %2915 = vmatprep.subr.bf16.mxu0 0
    %2916 = vmatpush1.bf16.msra.mxu0 %v2785
    %2917 = vmatprep.subr.bf16.mxu0 0
    %2918 = vmatpush1.bf16.msra.mxu0 %v2786
    %2919 = vmatprep.subr.bf16.mxu0 0
    %2920 = vmatpush1.bf16.msra.mxu0 %v2787
    %2921 = vmatprep.subr.bf16.mxu0 0
    %2922 = vmatpush1.bf16.msra.mxu0 %v2788
    %2923 = vmatprep.subr.bf16.mxu0 0
    %2924 = vmatpush1.bf16.msra.mxu0 %v2789
    %2925 = vmatprep.subr.bf16.mxu0 0
    %2926 = vmatpush1.bf16.msra.mxu0 %v2790
    %2927 = vmatprep.subr.bf16.mxu0 0
    %2928 = vmatpush1.bf16.msra.mxu0 %v2791
    %2929 = vmatprep.subr.bf16.mxu0 0
    %2930 = vmatpush1.bf16.msra.mxu0 %v2792
    %2931 = vmatprep.subr.bf16.mxu0 0
    %2932 = vmatpush1.bf16.msra.mxu0 %v2793
    %2933 = vmatprep.subr.bf16.mxu0 0
    %2934 = vmatpush1.bf16.msra.mxu0 %v2794
    %2935 = vmatprep.subr.bf16.mxu0 0
    %2936 = vmatpush1.bf16.msra.mxu0 %v2795
    %2937 = vmatprep.subr.bf16.mxu0 0
    %2938 = vmatpush1.bf16.msra.mxu0 %v2796
    %2939 = vmatprep.subr.bf16.mxu0 0
    %2940 = vmatpush1.bf16.msra.mxu0 %v2797
    %2941 = vmatprep.subr.bf16.mxu0 0
    %2942 = vmatpush1.bf16.msra.mxu0 %v2798
    %2943 = vmatprep.mubr.bf16.mxu0 %v2385
    %2944 = vmatmul.mubr.bf16.gmra.mrb[0].mxu0 %v2384
    %v2945 = vpop.f32.mrb[0].mxu0
    %v2946 = vadd.f32 %v2525, %v2945
    %v2947 = vpop.f32.mrb[0].mxu0
    %v2948 = vpop.f32.mrb[0].mxu0
    %v2949 = vpop.f32.mrb[0].mxu0
    %2950 = vdwg.mxu0
    %2951 = vmatprep.subr.bf16.mxu0 0
    %2952 = vmatpush1.bf16.msra.mxu0 %v2799
    %2953 = vmatprep.subr.bf16.mxu0 0
    %2954 = vmatpush1.bf16.msra.mxu0 %v2800
    %2955 = vmatprep.subr.bf16.mxu0 0
    %2956 = vmatpush1.bf16.msra.mxu0 %v2801
    %2957 = vmatprep.subr.bf16.mxu0 0
    %2958 = vmatpush1.bf16.msra.mxu0 %v2802
    %2959 = vmatprep.subr.bf16.mxu0 0
    %2960 = vmatpush1.bf16.msra.mxu0 %v2803
    %2961 = vmatprep.subr.bf16.mxu0 0
    %2962 = vmatpush1.bf16.msra.mxu0 %v2804
    %2963 = vmatprep.subr.bf16.mxu0 0
    %2964 = vmatpush1.bf16.msra.mxu0 %v2805
    %2965 = vmatprep.subr.bf16.mxu0 0
    %2966 = vmatpush1.bf16.msra.mxu0 %v2806
    %2967 = vmatprep.subr.bf16.mxu0 0
    %2968 = vmatpush1.bf16.msra.mxu0 %v2807
    %2969 = vmatprep.subr.bf16.mxu0 0
    %2970 = vmatpush1.bf16.msra.mxu0 %v2808
    %2971 = vmatprep.subr.bf16.mxu0 0
    %2972 = vmatpush1.bf16.msra.mxu0 %v2809
    %2973 = vmatprep.subr.bf16.mxu0 0
    %2974 = vmatpush1.bf16.msra.mxu0 %v2810
    %2975 = vmatprep.subr.bf16.mxu0 0
    %2976 = vmatpush1.bf16.msra.mxu0 %v2811
    %2977 = vmatprep.subr.bf16.mxu0 0
    %2978 = vmatpush1.bf16.msra.mxu0 %v2812
    %2979 = vmatprep.subr.bf16.mxu0 0
    %2980 = vmatpush1.bf16.msra.mxu0 %v2813
    %2981 = vmatprep.subr.bf16.mxu0 0
    %2982 = vmatpush1.bf16.msra.mxu0 %v2814
    %2983 = vmatprep.mubr.bf16.mxu0 %v2387
    %2984 = vmatmul.mubr.bf16.gmra.mrb[0].mxu0 %v2386
    %v2985 = vpop.f32.mrb[0].mxu0
    %v2986 = vadd.f32 %v2946, %v2985
    %v2987 = vpop.f32.mrb[0].mxu0
    %v2988 = vpop.f32.mrb[0].mxu0
    %v2989 = vpop.f32.mrb[0].mxu0
    %2990 = vdwg.mxu0
    %2991 = vmatprep.subr.bf16.mxu0 0
    %2992 = vmatpush1.bf16.msra.mxu0 %v2815
    %2993 = vmatprep.subr.bf16.mxu0 0
    %2994 = vmatpush1.bf16.msra.mxu0 %v2816
    %2995 = vmatprep.subr.bf16.mxu0 0
    %2996 = vmatpush1.bf16.msra.mxu0 %v2817
    %2997 = vmatprep.subr.bf16.mxu0 0
    %2998 = vmatpush1.bf16.msra.mxu0 %v2818
    %2999 = vmatprep.subr.bf16.mxu0 0
    %3000 = vmatpush1.bf16.msra.mxu0 %v2819
    %3001 = vmatprep.subr.bf16.mxu0 0
    %3002 = vmatpush1.bf16.msra.mxu0 %v2820
    %3003 = vmatprep.subr.bf16.mxu0 0
    %3004 = vmatpush1.bf16.msra.mxu0 %v2821
    %3005 = vmatprep.subr.bf16.mxu0 0
    %3006 = vmatpush1.bf16.msra.mxu0 %v2822
    %3007 = vmatprep.subr.bf16.mxu0 0
    %3008 = vmatpush1.bf16.msra.mxu0 %v2823
    %3009 = vmatprep.subr.bf16.mxu0 0
    %3010 = vmatpush1.bf16.msra.mxu0 %v2824
    %3011 = vmatprep.subr.bf16.mxu0 0
    %3012 = vmatpush1.bf16.msra.mxu0 %v2825
    %3013 = vmatprep.subr.bf16.mxu0 0
    %3014 = vmatpush1.bf16.msra.mxu0 %v2826
    %3015 = vmatprep.subr.bf16.mxu0 0
    %3016 = vmatpush1.bf16.msra.mxu0 %v2827
    %3017 = vmatprep.subr.bf16.mxu0 0
    %3018 = vmatpush1.bf16.msra.mxu0 %v2828
    %3019 = vmatprep.subr.bf16.mxu0 0
    %3020 = vmatpush1.bf16.msra.mxu0 %v2829
    %3021 = vmatprep.subr.bf16.mxu0 0
    %3022 = vmatpush1.bf16.msra.mxu0 %v2830
    %3023 = vmatprep.mubr.bf16.mxu0 %v2389
    %3024 = vmatmul.mubr.bf16.gmra.mrb[0].mxu0 %v2388
    %v3025 = vpop.f32.mrb[0].mxu0
    %v3026 = vadd.f32 %v2986, %v3025
    %v3027 = vpop.f32.mrb[0].mxu0
    %v3028 = vpop.f32.mrb[0].mxu0
    %v3029 = vpop.f32.mrb[0].mxu0
    %3030 = vdwg.mxu0
    %3031 = vmatprep.subr.bf16.mxu0 0
    %3032 = vmatpush1.bf16.msra.mxu0 %v2831
    %3033 = vmatprep.subr.bf16.mxu0 0
    %3034 = vmatpush1.bf16.msra.mxu0 %v2832
    %3035 = vmatprep.subr.bf16.mxu0 0
    %3036 = vmatpush1.bf16.msra.mxu0 %v2833
    %3037 = vmatprep.subr.bf16.mxu0 0
    %3038 = vmatpush1.bf16.msra.mxu0 %v2834
    %3039 = vmatprep.subr.bf16.mxu0 0
    %3040 = vmatpush1.bf16.msra.mxu0 %v2835
    %3041 = vmatprep.subr.bf16.mxu0 0
    %3042 = vmatpush1.bf16.msra.mxu0 %v2836
    %3043 = vmatprep.subr.bf16.mxu0 0
    %3044 = vmatpush1.bf16.msra.mxu0 %v2837
    %3045 = vmatprep.subr.bf16.mxu0 0
    %3046 = vmatpush1.bf16.msra.mxu0 %v2838
    %3047 = vmatprep.subr.bf16.mxu0 0
    %3048 = vmatpush1.bf16.msra.mxu0 %v2839
    %3049 = vmatprep.subr.bf16.mxu0 0
    %3050 = vmatpush1.bf16.msra.mxu0 %v2840
    %3051 = vmatprep.subr.bf16.mxu0 0
    %3052 = vmatpush1.bf16.msra.mxu0 %v2841
    %3053 = vmatprep.subr.bf16.mxu0 0
    %3054 = vmatpush1.bf16.msra.mxu0 %v2842
    %3055 = vmatprep.subr.bf16.mxu0 0
    %3056 = vmatpush1.bf16.msra.mxu0 %v2843
    %3057 = vmatprep.subr.bf16.mxu0 0
    %3058 = vmatpush1.bf16.msra.mxu0 %v2844
    %3059 = vmatprep.subr.bf16.mxu0 0
    %3060 = vmatpush1.bf16.msra.mxu0 %v2845
    %3061 = vmatprep.subr.bf16.mxu0 0
    %3062 = vmatpush1.bf16.msra.mxu0 %v2846
    %3063 = vmatprep.mubr.bf16.mxu0 %v2391
    %3064 = vmatmul.mubr.bf16.gmra.mrb[0].mxu0 %v2390
    %v3065 = vpop.f32.mrb[0].mxu0
    %v3066 = vadd.f32 %v3026, %v3065
    %v3067 = vpop.f32.mrb[0].mxu0
    %v3068 = vpop.f32.mrb[0].mxu0
    %v3069 = vpop.f32.mrb[0].mxu0
    %3070 = vdwg.mxu0
    %3071 = vst [vmem:[#allocation10] sm:$0xff] %v3066
    // Predicated region
    $region46: #{tpu_custom_call.1} parent=1 // pred_check
      _
    $region47: #{tpu_custom_call.1} parent=1 // pred_check_branch
      %3073 = sbr.rel (0) target = $region49
    $region48: #{tpu_custom_call.1} parent=1 // pred_region
      %s3075 = ssub.s32 128, 128
      %3076 = vsyncadd [#allocation4], %s3075
      %s3078 = sshll.u32 [#allocation10], 4
      %s3079 = int_to_ptr.vmem [resolvable:$true] %s3078
      %3081 = dma.vmem_to_hbm [thread:$0]  %s3079, 128, %s7, [#allocation4]
    $region49: #{tpu_custom_call.1} parent=1 // pred_fallthru
      _
    // Predicated region
    $region50: #{tpu_custom_call.1} parent=1 // pred_check
      _
    $region51: #{tpu_custom_call.1} parent=1 // pred_check_branch
      %3083 = sbr.rel (0) target = $region53
    $region52: #{tpu_custom_call.1} parent=1 // pred_region
      %3084 = dma.done [#allocation4], 128
    $region53: #{tpu_custom_call.1} parent=1 // pred_fallthru
      _
    %3085 = vsyncpa [#allocation3], 1
    %3086 = vsyncpa [#allocation6], 1
    %3087 = vsyncpa [#allocation9], 1
    %3088 = vsyncpa [#allocation4], 1

</llo_original>
